<compile_context>
chip_gen: v5e
topology: v5e:2x2
jax: 0.10.0
libtpu: 0.0.40
codegen_flags: <defaults>
</compile_context>

<pallas_src>
import functools

import jax
import jax.numpy as jnp
from jax.experimental import pallas as pl
from jax.experimental.pallas import tpu as pltpu


# ----------------------------------------------------------------------------
# Kernel
# ----------------------------------------------------------------------------
def _block_kernel(x_ref, n1w_ref, n1b_ref, wqkv_ref, wproj_ref, bproj_ref,
                  n2w_ref, n2b_ref, wfc1_ref, bfc1_ref, wfc2_ref, bfc2_ref,
                  o_ref, *, num_heads, tokens_per_batch, eps):
    f32 = jnp.float32
    bf16 = jnp.bfloat16

    x = x_ref[...].astype(f32)                       # (R, C) rows = Bblk * N
    R, C = x.shape
    N = tokens_per_batch
    Bblk = R // N
    hd = C // num_heads
    G = Bblk * num_heads

    # ---- parameters loaded once (broadcasts hoisted out of any loops) ----
    n1w = n1w_ref[...]
    n1b = n1b_ref[...]
    n2w = n2w_ref[...]
    n2b = n2b_ref[...]
    b_proj = bproj_ref[...]                          # (1, C)
    b_fc1 = bfc1_ref[...]                            # (1, H)
    b_fc2 = bfc2_ref[...]                            # (1, C)

    # ---- norm1 (LayerNorm over channels, biased variance) ----
    mu = jnp.mean(x, axis=-1, keepdims=True)
    var = jnp.mean((x - mu) ** 2, axis=-1, keepdims=True)
    xn = (x - mu) * jax.lax.rsqrt(var + eps) * n1w + n1b        # (R, C) f32

    # ---- QKV projection: single bf16 matmul, f32 accumulation ----
    # (attention scale is already folded into the Q columns of wqkv in the wrapper)
    qkv = jnp.dot(xn.astype(bf16), wqkv_ref[...],
                  preferred_element_type=f32)                   # (R, 3C) f32

    # ---- gather heads: num_heads static lane slices, leading-dim reshape only ----
    # (R, hd) -> (Bblk, N, hd) is a row-major split of the leading dim (no transpose).
    # Attention batch order is (head, batch): g = h * Bblk + b.
    def split_heads(base):
        parts = [qkv[:, base + h * hd: base + (h + 1) * hd].reshape(Bblk, N, hd)
                 for h in range(num_heads)]
        return parts[0] if num_heads == 1 else jnp.concatenate(parts, axis=0)

    q_h = split_heads(0 * C).astype(bf16)            # (G, N, hd)
    k_h = split_heads(1 * C).astype(bf16)
    v_h = split_heads(2 * C).astype(bf16)

    # ---- batched attention (one contraction for all heads/batches) ----
    logits = jnp.einsum("gqd,gkd->gqk", q_h, k_h,
                        preferred_element_type=f32)             # (G, N, N) f32
    logits = logits - jnp.max(logits, axis=-1, keepdims=True)
    p = jnp.exp(logits)
    p = p * pl.reciprocal(jnp.sum(p, axis=-1, keepdims=True), approx=True)
    head_out = jnp.einsum("gqk,gkd->gqd", p.astype(bf16), v_h,
                          preferred_element_type=f32)           # (G, N, hd) f32

    # ---- merge heads back to (R, C), then ONE projection matmul ----
    cols = [head_out[h * Bblk:(h + 1) * Bblk].reshape(R, hd)
            for h in range(num_heads)]
    attn_cat = cols[0] if num_heads == 1 else jnp.concatenate(cols, axis=-1)

    proj = jnp.dot(attn_cat.astype(bf16), wproj_ref[...],
                   preferred_element_type=f32) + b_proj         # (R, C)

    x1 = x + proj                                               # residual 1

    # ---- norm2 ----
    mu2 = jnp.mean(x1, axis=-1, keepdims=True)
    var2 = jnp.mean((x1 - mu2) ** 2, axis=-1, keepdims=True)
    x2n = (x1 - mu2) * jax.lax.rsqrt(var2 + eps) * n2w + n2b

    # ---- MLP: fc1 -> GELU(exact, erf) -> fc2 ----
    h1 = jnp.dot(x2n.astype(bf16), wfc1_ref[...],
                 preferred_element_type=f32) + b_fc1            # (R, H)
    inv_sqrt2 = jnp.float32(0.7071067811865476)
    h1 = 0.5 * h1 * (1.0 + jax.lax.erf(h1 * inv_sqrt2))
    h2 = jnp.dot(h1.astype(bf16), wfc2_ref[...],
                 preferred_element_type=f32) + b_fc2            # (R, C)

    o_ref[...] = (x1 + h2).astype(o_ref.dtype)                  # residual 2


# ----------------------------------------------------------------------------
# Wrapper
# ----------------------------------------------------------------------------
def block_forward(x, params, *, num_heads, eps=1e-5, batch_block=None):
    B, N, C = x.shape
    assert C % num_heads == 0, "dim must be divisible by num_heads"
    head_dim = C // num_heads
    scale = head_dim ** (-0.5)

    if batch_block is None:
        batch_block = B                      # small shapes: one grid step
    assert B % batch_block == 0
    R = batch_block * N
    assert (R % 8 == 0) or (R == B * N), "row block must be sublane-aligned"

    f32 = jnp.float32
    bf16 = jnp.bfloat16

    # Fold the attention scale into the Q columns of w_qkv (free, done in XLA);
    # cast all matmul weights to bf16 (MXU-native); biases / LN params stay f32.
    w_qkv = params["w_qkv"].astype(f32)
    w_qkv = jnp.concatenate([w_qkv[:, :C] * scale, w_qkv[:, C:]], axis=1).astype(bf16)

    weights = [
        params["n1_w"].astype(f32), params["n1_b"].astype(f32),
        w_qkv,
        params["w_proj"].astype(bf16), params["b_proj"].astype(f32),
        params["n2_w"].astype(f32), params["n2_b"].astype(f32),
        params["w_fc1"].astype(bf16), params["b_fc1"].astype(f32),
        params["w_fc2"].astype(bf16), params["b_fc2"].astype(f32),
    ]
    hidden = params["w_fc1"].shape[1]

    # Present x as a (B*N, C) row matrix so matmuls see M = batch_block * N rows.
    x_rows = x.reshape(B * N, C)

    def full_spec(arr):
        nd = arr.ndim
        return pl.BlockSpec(arr.shape, lambda b, _nd=nd: (0,) * _nd)

    in_specs = [pl.BlockSpec((R, C), lambda b: (b, 0))]
    in_specs += [full_spec(w) for w in weights]
    out_spec = pl.BlockSpec((R, C), lambda b: (b, 0))

    # Explicit VMEM budget: resident weights + double-buffered I/O + activation slack,
    # clamped to stay valid on v7x (64 MiB physical VMEM).
    g = batch_block * num_heads
    weight_bytes = sum(int(w.size) * w.dtype.itemsize for w in weights)
    io_bytes = 2 * 2 * R * C * x.dtype.itemsize                     # x + out, 2 bufs each
    act_bytes = 4 * R * (3 * C + hidden + 8 * C) + 12 * g * N * N   # qkv/mlp/attn temporaries
    est = weight_bytes + io_bytes + 2 * act_bytes
    vmem_limit = int(min(64 * 2 ** 20, max(16 * 2 ** 20, est)))

    kernel = functools.partial(_block_kernel, num_heads=num_heads,
                               tokens_per_batch=N, eps=eps)

    out_rows = pl.pallas_call(
        kernel,
        out_shape=jax.ShapeDtypeStruct((B * N, C), x.dtype),
        grid_spec=pltpu.PrefetchScalarGridSpec(
            num_scalar_prefetch=0,
            grid=(B // batch_block,),
            in_specs=in_specs,
            out_specs=out_spec,
        ),
        compiler_params=pltpu.CompilerParams(
            dimension_semantics=("parallel",),
            vmem_limit_bytes=vmem_limit),
    )(x_rows, *weights)

    return out_rows.reshape(B, N, C)


# ----------------------------------------------------------------------------
# Pure-JAX reference (mirrors the PyTorch forward exactly, f32)
# ----------------------------------------------------------------------------
def block_reference(x, params, *, num_heads, eps=1e-5):
    B, N, C = x.shape
    hd = C // num_heads
    scale = hd ** (-0.5)

    def ln(v, w, b):
        mu = jnp.mean(v, -1, keepdims=True)
        var = jnp.mean((v - mu) ** 2, -1, keepdims=True)
        return (v - mu) / jnp.sqrt(var + eps) * w + b

    xn = ln(x, params["n1_w"][0], params["n1_b"][0])
    qkv = xn @ params["w_qkv"]                            # (B, N, 3C)
    qkv = qkv.reshape(B, N, 3, num_heads, hd).transpose(2, 0, 3, 1, 4)
    q, k, v = qkv[0], qkv[1], qkv[2]                      # (B, H, N, hd)
    attn = jnp.einsum("bhqd,bhkd->bhqk", q, k) * scale
    attn = jax.nn.softmax(attn, axis=-1)
    out = jnp.einsum("bhqk,bhkd->bhqd", attn, v)
    out = out.transpose(0, 2, 1, 3).reshape(B, N, C)
    out = out @ params["w_proj"] + params["b_proj"][0]
    x1 = x + out

    x2n = ln(x1, params["n2_w"][0], params["n2_b"][0])
    h = x2n @ params["w_fc1"] + params["b_fc1"][0]
    h = 0.5 * h * (1.0 + jax.lax.erf(h / jnp.sqrt(2.0)))
    h = h @ params["w_fc2"] + params["b_fc2"][0]
    return x1 + h


# ----------------------------------------------------------------------------
# Main
# ----------------------------------------------------------------------------
if __name__ == "__main__":
    # Lane-aligned small shapes: C = 128 (one full lane width), R = B*N = 32 rows.
    B, N, C = 2, 16, 128
    num_heads = 4
    mlp_ratio = 4.0
    H = int(C * mlp_ratio)

    key = jax.random.PRNGKey(0)
    ks = jax.random.split(key, 8)

    # Deterministic synthetic parameters (qkv_bias=False as in module defaults).
    params = {
        "n1_w": jnp.ones((1, C), jnp.float32),
        "n1_b": jnp.zeros((1, C), jnp.float32),
        "w_qkv": jax.random.normal(ks[0], (C, 3 * C), jnp.float32) * 0.05,
        "w_proj": jax.random.normal(ks[1], (C, C), jnp.float32) * 0.05,
        "b_proj": jax.random.normal(ks[2], (1, C), jnp.float32) * 0.01,
        "n2_w": jnp.ones((1, C), jnp.float32),
        "n2_b": jnp.zeros((1, C), jnp.float32),
        "w_fc1": jax.random.normal(ks[3], (C, H), jnp.float32) * 0.05,
        "b_fc1": jax.random.normal(ks[4], (1, H), jnp.float32) * 0.01,
        "w_fc2": jax.random.normal(ks[5], (H, C), jnp.float32) * 0.05,
        "b_fc2": jnp.zeros((1, C), jnp.float32) + 0.01,
    }

    x = jax.random.normal(ks[7], (B, N, C), jnp.float32)

    out = block_forward(x, params, num_heads=num_heads)
    out = jax.block_until_ready(out)

    ref = jax.block_until_ready(block_reference(x, params, num_heads=num_heads))

    assert out.shape == (B, N, C)
    assert jnp.all(jnp.isfinite(out))
    # bf16 matmul inputs (f32 accumulation) -> loosened tolerance vs f32 reference.
    assert jnp.allclose(out, ref, rtol=2e-2, atol=2e-2), (
        float(jnp.max(jnp.abs(out - ref))))

    print("KERNEL_OK")
</pallas_src>

<mosaic_0001>
module attributes {stable_mosaic.version = 11 : i64} {
  func.func @_block_kernel(%arg0: i32, %arg1: memref<32x128xf32, #tpu.memory_space<vmem>>, %arg2: memref<1x128xf32, #tpu.memory_space<vmem>>, %arg3: memref<1x128xf32, #tpu.memory_space<vmem>>, %arg4: memref<128x384xbf16, #tpu.memory_space<vmem>>, %arg5: memref<128x128xbf16, #tpu.memory_space<vmem>>, %arg6: memref<1x128xf32, #tpu.memory_space<vmem>>, %arg7: memref<1x128xf32, #tpu.memory_space<vmem>>, %arg8: memref<1x128xf32, #tpu.memory_space<vmem>>, %arg9: memref<128x512xbf16, #tpu.memory_space<vmem>>, %arg10: memref<1x512xf32, #tpu.memory_space<vmem>>, %arg11: memref<512x128xbf16, #tpu.memory_space<vmem>>, %arg12: memref<1x128xf32, #tpu.memory_space<vmem>>, %arg13: memref<32x128xf32, #tpu.memory_space<vmem>>) attributes {dimension_semantics = [#tpu.dimension_semantics<parallel>], iteration_bounds = array<i64: 1>, scalar_prefetch = 0 : i64, scratch_operands = 0 : i64, tpu.core_type = #tpu.core_type<tc>, window_params = [{transform_indices = @transform_0, window_bounds = array<i64: 32, 128>}, {pipeline_mode = #tpu.pipeline_mode<synchronous>, transform_indices = @transform_1, window_bounds = array<i64: 1, 128>}, {pipeline_mode = #tpu.pipeline_mode<synchronous>, transform_indices = @transform_2, window_bounds = array<i64: 1, 128>}, {pipeline_mode = #tpu.pipeline_mode<synchronous>, transform_indices = @transform_3, window_bounds = array<i64: 128, 384>}, {pipeline_mode = #tpu.pipeline_mode<synchronous>, transform_indices = @transform_4, window_bounds = array<i64: 128, 128>}, {pipeline_mode = #tpu.pipeline_mode<synchronous>, transform_indices = @transform_5, window_bounds = array<i64: 1, 128>}, {pipeline_mode = #tpu.pipeline_mode<synchronous>, transform_indices = @transform_6, window_bounds = array<i64: 1, 128>}, {pipeline_mode = #tpu.pipeline_mode<synchronous>, transform_indices = @transform_7, window_bounds = array<i64: 1, 128>}, {pipeline_mode = #tpu.pipeline_mode<synchronous>, transform_indices = @transform_8, window_bounds = array<i64: 128, 512>}, {pipeline_mode = #tpu.pipeline_mode<synchronous>, transform_indices = @transform_9, window_bounds = array<i64: 1, 512>}, {pipeline_mode = #tpu.pipeline_mode<synchronous>, transform_indices = @transform_10, window_bounds = array<i64: 512, 128>}, {pipeline_mode = #tpu.pipeline_mode<synchronous>, transform_indices = @transform_11, window_bounds = array<i64: 1, 128>}, {transform_indices = @transform_12, window_bounds = array<i64: 32, 128>}]} {
    %c0 = arith.constant 0 : index
    %c0_0 = arith.constant 0 : index
    %0 = vector.load %arg1[%c0, %c0_0] : memref<32x128xf32, #tpu.memory_space<vmem>>, vector<32x128xf32>
    %c0_1 = arith.constant 0 : index
    %c0_2 = arith.constant 0 : index
    %1 = vector.load %arg2[%c0_1, %c0_2] : memref<1x128xf32, #tpu.memory_space<vmem>>, vector<1x128xf32>
    %c0_3 = arith.constant 0 : index
    %c0_4 = arith.constant 0 : index
    %2 = vector.load %arg3[%c0_3, %c0_4] : memref<1x128xf32, #tpu.memory_space<vmem>>, vector<1x128xf32>
    %c0_5 = arith.constant 0 : index
    %c0_6 = arith.constant 0 : index
    %3 = vector.load %arg7[%c0_5, %c0_6] : memref<1x128xf32, #tpu.memory_space<vmem>>, vector<1x128xf32>
    %c0_7 = arith.constant 0 : index
    %c0_8 = arith.constant 0 : index
    %4 = vector.load %arg8[%c0_7, %c0_8] : memref<1x128xf32, #tpu.memory_space<vmem>>, vector<1x128xf32>
    %c0_9 = arith.constant 0 : index
    %c0_10 = arith.constant 0 : index
    %5 = vector.load %arg6[%c0_9, %c0_10] : memref<1x128xf32, #tpu.memory_space<vmem>>, vector<1x128xf32>
    %c0_11 = arith.constant 0 : index
    %c0_12 = arith.constant 0 : index
    %6 = vector.load %arg10[%c0_11, %c0_12] : memref<1x512xf32, #tpu.memory_space<vmem>>, vector<1x512xf32>
    %c0_13 = arith.constant 0 : index
    %c0_14 = arith.constant 0 : index
    %7 = vector.load %arg12[%c0_13, %c0_14] : memref<1x128xf32, #tpu.memory_space<vmem>>, vector<1x128xf32>
    %cst = arith.constant dense<0.000000e+00> : vector<32xf32>
    %8 = vector.multi_reduction <add>, %0, %cst [1] : vector<32x128xf32> to vector<32xf32>
    %9 = vector.shape_cast %8 : vector<32xf32> to vector<32x1xf32>
    %cst_15 = arith.constant 1.280000e+02 : f32
    %10 = vector.broadcast %cst_15 : f32 to vector<32x1xf32>
    %11 = arith.divf %9, %10 : vector<32x1xf32>
    %12 = vector.broadcast %11 : vector<32x1xf32> to vector<32x128xf32>
    %13 = arith.subf %0, %12 : vector<32x128xf32>
    %14 = arith.mulf %13, %13 : vector<32x128xf32>
    %cst_16 = arith.constant dense<0.000000e+00> : vector<32xf32>
    %15 = vector.multi_reduction <add>, %14, %cst_16 [1] : vector<32x128xf32> to vector<32xf32>
    %16 = vector.shape_cast %15 : vector<32xf32> to vector<32x1xf32>
    %cst_17 = arith.constant 1.280000e+02 : f32
    %17 = vector.broadcast %cst_17 : f32 to vector<32x1xf32>
    %18 = arith.divf %16, %17 : vector<32x1xf32>
    %19 = vector.broadcast %11 : vector<32x1xf32> to vector<32x128xf32>
    %20 = arith.subf %0, %19 : vector<32x128xf32>
    %cst_18 = arith.constant 9.99999974E-6 : f32
    %21 = vector.broadcast %cst_18 : f32 to vector<32x1xf32>
    %22 = arith.addf %18, %21 : vector<32x1xf32>
    %23 = math.rsqrt %22 : vector<32x1xf32>
    %24 = vector.broadcast %23 : vector<32x1xf32> to vector<32x128xf32>
    %25 = arith.mulf %20, %24 : vector<32x128xf32>
    %26 = vector.broadcast %1 : vector<1x128xf32> to vector<32x128xf32>
    %27 = arith.mulf %25, %26 : vector<32x128xf32>
    %28 = vector.broadcast %2 : vector<1x128xf32> to vector<32x128xf32>
    %29 = arith.addf %27, %28 : vector<32x128xf32>
    %30 = arith.truncf %29 : vector<32x128xf32> to vector<32x128xbf16>
    %c0_19 = arith.constant 0 : index
    %c0_20 = arith.constant 0 : index
    %31 = vector.load %arg4[%c0_19, %c0_20] : memref<128x384xbf16, #tpu.memory_space<vmem>>, vector<128x384xbf16>
    %cst_21 = arith.constant dense<0.000000e+00> : vector<32x384xf32>
    %32 = tpu.matmul %30, %31, %cst_21 {dimension_numbers = #tpu.dot_dimension_numbers<[1], [0], [0], [1], [0, 0, 1, 1], [], []>} : vector<32x128xbf16>, vector<128x384xbf16>, vector<32x384xf32> -> vector<32x384xf32>
    %33 = vector.extract_strided_slice %32 {offsets = [0, 0], sizes = [32, 32], strides = [1, 1]} : vector<32x384xf32> to vector<32x32xf32>
    %34 = vector.shape_cast %33 : vector<32x32xf32> to vector<2x16x32xf32>
    %35 = vector.extract_strided_slice %32 {offsets = [0, 32], sizes = [32, 32], strides = [1, 1]} : vector<32x384xf32> to vector<32x32xf32>
    %36 = vector.shape_cast %35 : vector<32x32xf32> to vector<2x16x32xf32>
    %37 = vector.extract_strided_slice %32 {offsets = [0, 64], sizes = [32, 32], strides = [1, 1]} : vector<32x384xf32> to vector<32x32xf32>
    %38 = vector.shape_cast %37 : vector<32x32xf32> to vector<2x16x32xf32>
    %39 = vector.extract_strided_slice %32 {offsets = [0, 96], sizes = [32, 32], strides = [1, 1]} : vector<32x384xf32> to vector<32x32xf32>
    %40 = vector.shape_cast %39 : vector<32x32xf32> to vector<2x16x32xf32>
    %41 = tpu.concatenate %34, %36, %38, %40 in 0 : vector<2x16x32xf32>, vector<2x16x32xf32>, vector<2x16x32xf32>, vector<2x16x32xf32> -> vector<8x16x32xf32>
    %42 = arith.truncf %41 : vector<8x16x32xf32> to vector<8x16x32xbf16>
    %43 = vector.extract_strided_slice %32 {offsets = [0, 128], sizes = [32, 32], strides = [1, 1]} : vector<32x384xf32> to vector<32x32xf32>
    %44 = vector.shape_cast %43 : vector<32x32xf32> to vector<2x16x32xf32>
    %45 = vector.extract_strided_slice %32 {offsets = [0, 160], sizes = [32, 32], strides = [1, 1]} : vector<32x384xf32> to vector<32x32xf32>
    %46 = vector.shape_cast %45 : vector<32x32xf32> to vector<2x16x32xf32>
    %47 = vector.extract_strided_slice %32 {offsets = [0, 192], sizes = [32, 32], strides = [1, 1]} : vector<32x384xf32> to vector<32x32xf32>
    %48 = vector.shape_cast %47 : vector<32x32xf32> to vector<2x16x32xf32>
    %49 = vector.extract_strided_slice %32 {offsets = [0, 224], sizes = [32, 32], strides = [1, 1]} : vector<32x384xf32> to vector<32x32xf32>
    %50 = vector.shape_cast %49 : vector<32x32xf32> to vector<2x16x32xf32>
    %51 = tpu.concatenate %44, %46, %48, %50 in 0 : vector<2x16x32xf32>, vector<2x16x32xf32>, vector<2x16x32xf32>, vector<2x16x32xf32> -> vector<8x16x32xf32>
    %52 = arith.truncf %51 : vector<8x16x32xf32> to vector<8x16x32xbf16>
    %53 = vector.extract_strided_slice %32 {offsets = [0, 256], sizes = [32, 32], strides = [1, 1]} : vector<32x384xf32> to vector<32x32xf32>
    %54 = vector.shape_cast %53 : vector<32x32xf32> to vector<2x16x32xf32>
    %55 = vector.extract_strided_slice %32 {offsets = [0, 288], sizes = [32, 32], strides = [1, 1]} : vector<32x384xf32> to vector<32x32xf32>
    %56 = vector.shape_cast %55 : vector<32x32xf32> to vector<2x16x32xf32>
    %57 = vector.extract_strided_slice %32 {offsets = [0, 320], sizes = [32, 32], strides = [1, 1]} : vector<32x384xf32> to vector<32x32xf32>
    %58 = vector.shape_cast %57 : vector<32x32xf32> to vector<2x16x32xf32>
    %59 = vector.extract_strided_slice %32 {offsets = [0, 352], sizes = [32, 32], strides = [1, 1]} : vector<32x384xf32> to vector<32x32xf32>
    %60 = vector.shape_cast %59 : vector<32x32xf32> to vector<2x16x32xf32>
    %61 = tpu.concatenate %54, %56, %58, %60 in 0 : vector<2x16x32xf32>, vector<2x16x32xf32>, vector<2x16x32xf32>, vector<2x16x32xf32> -> vector<8x16x32xf32>
    %62 = arith.truncf %61 : vector<8x16x32xf32> to vector<8x16x32xbf16>
    "tpu.trace_start"() <{level = 10 : i32, message = "gqd,gkd->gqk"}> : () -> ()
    %cst_22 = arith.constant dense<0.000000e+00> : vector<8x16x16xf32>
    %63 = tpu.matmul %42, %52, %cst_22 {dimension_numbers = #tpu.dot_dimension_numbers<[2], [2], [1], [1], [0, 0, 0, 1, 1, 1], [0], [0]>} : vector<8x16x32xbf16>, vector<8x16x32xbf16>, vector<8x16x16xf32> -> vector<8x16x16xf32>
    "tpu.trace_stop"() : () -> ()
    %cst_23 = arith.constant dense<0xFF800000> : vector<8x16xf32>
    %64 = vector.multi_reduction <maximumf>, %63, %cst_23 [2] : vector<8x16x16xf32> to vector<8x16xf32>
    %65 = vector.shape_cast %64 : vector<8x16xf32> to vector<8x16x1xf32>
    %66 = vector.broadcast %65 : vector<8x16x1xf32> to vector<8x16x16xf32>
    %67 = arith.subf %63, %66 : vector<8x16x16xf32>
    %68 = math.exp %67 : vector<8x16x16xf32>
    %cst_24 = arith.constant dense<0.000000e+00> : vector<8x16xf32>
    %69 = vector.multi_reduction <add>, %68, %cst_24 [2] : vector<8x16x16xf32> to vector<8x16xf32>
    %70 = vector.shape_cast %69 : vector<8x16xf32> to vector<8x16x1xf32>
    %71 = tpu.reciprocal %70 {approx = true} : vector<8x16x1xf32> -> vector<8x16x1xf32>
    %72 = vector.broadcast %71 : vector<8x16x1xf32> to vector<8x16x16xf32>
    %73 = arith.mulf %68, %72 : vector<8x16x16xf32>
    %74 = arith.truncf %73 : vector<8x16x16xf32> to vector<8x16x16xbf16>
    "tpu.trace_start"() <{level = 10 : i32, message = "gqk,gkd->gqd"}> : () -> ()
    %cst_25 = arith.constant dense<0.000000e+00> : vector<8x16x32xf32>
    %75 = tpu.matmul %74, %62, %cst_25 {dimension_numbers = #tpu.dot_dimension_numbers<[2], [1], [1], [2], [0, 0, 0, 1, 1, 2], [0], [0]>} : vector<8x16x16xbf16>, vector<8x16x32xbf16>, vector<8x16x32xf32> -> vector<8x16x32xf32>
    "tpu.trace_stop"() : () -> ()
    %76 = vector.extract_strided_slice %75 {offsets = [0, 0, 0], sizes = [2, 16, 32], strides = [1, 1, 1]} : vector<8x16x32xf32> to vector<2x16x32xf32>
    %77 = vector.shape_cast %76 : vector<2x16x32xf32> to vector<32x32xf32>
    %78 = vector.extract_strided_slice %75 {offsets = [2, 0, 0], sizes = [2, 16, 32], strides = [1, 1, 1]} : vector<8x16x32xf32> to vector<2x16x32xf32>
    %79 = vector.shape_cast %78 : vector<2x16x32xf32> to vector<32x32xf32>
    %80 = vector.extract_strided_slice %75 {offsets = [4, 0, 0], sizes = [2, 16, 32], strides = [1, 1, 1]} : vector<8x16x32xf32> to vector<2x16x32xf32>
    %81 = vector.shape_cast %80 : vector<2x16x32xf32> to vector<32x32xf32>
    %82 = vector.extract_strided_slice %75 {offsets = [6, 0, 0], sizes = [2, 16, 32], strides = [1, 1, 1]} : vector<8x16x32xf32> to vector<2x16x32xf32>
    %83 = vector.shape_cast %82 : vector<2x16x32xf32> to vector<32x32xf32>
    %84 = tpu.concatenate %77, %79, %81, %83 in 1 : vector<32x32xf32>, vector<32x32xf32>, vector<32x32xf32>, vector<32x32xf32> -> vector<32x128xf32>
    %85 = arith.truncf %84 : vector<32x128xf32> to vector<32x128xbf16>
    %c0_26 = arith.constant 0 : index
    %c0_27 = arith.constant 0 : index
    %86 = vector.load %arg5[%c0_26, %c0_27] : memref<128x128xbf16, #tpu.memory_space<vmem>>, vector<128x128xbf16>
    %cst_28 = arith.constant dense<0.000000e+00> : vector<32x128xf32>
    %87 = tpu.matmul %85, %86, %cst_28 {dimension_numbers = #tpu.dot_dimension_numbers<[1], [0], [0], [1], [0, 0, 1, 1], [], []>} : vector<32x128xbf16>, vector<128x128xbf16>, vector<32x128xf32> -> vector<32x128xf32>
    %88 = vector.broadcast %5 : vector<1x128xf32> to vector<32x128xf32>
    %89 = arith.addf %87, %88 : vector<32x128xf32>
    %90 = arith.addf %0, %89 : vector<32x128xf32>
    %cst_29 = arith.constant dense<0.000000e+00> : vector<32xf32>
    %91 = vector.multi_reduction <add>, %90, %cst_29 [1] : vector<32x128xf32> to vector<32xf32>
    %92 = vector.shape_cast %91 : vector<32xf32> to vector<32x1xf32>
    %cst_30 = arith.constant 1.280000e+02 : f32
    %93 = vector.broadcast %cst_30 : f32 to vector<32x1xf32>
    %94 = arith.divf %92, %93 : vector<32x1xf32>
    %95 = vector.broadcast %94 : vector<32x1xf32> to vector<32x128xf32>
    %96 = arith.subf %90, %95 : vector<32x128xf32>
    %97 = arith.mulf %96, %96 : vector<32x128xf32>
    %cst_31 = arith.constant dense<0.000000e+00> : vector<32xf32>
    %98 = vector.multi_reduction <add>, %97, %cst_31 [1] : vector<32x128xf32> to vector<32xf32>
    %99 = vector.shape_cast %98 : vector<32xf32> to vector<32x1xf32>
    %cst_32 = arith.constant 1.280000e+02 : f32
    %100 = vector.broadcast %cst_32 : f32 to vector<32x1xf32>
    %101 = arith.divf %99, %100 : vector<32x1xf32>
    %102 = vector.broadcast %94 : vector<32x1xf32> to vector<32x128xf32>
    %103 = arith.subf %90, %102 : vector<32x128xf32>
    %cst_33 = arith.constant 9.99999974E-6 : f32
    %104 = vector.broadcast %cst_33 : f32 to vector<32x1xf32>
    %105 = arith.addf %101, %104 : vector<32x1xf32>
    %106 = math.rsqrt %105 : vector<32x1xf32>
    %107 = vector.broadcast %106 : vector<32x1xf32> to vector<32x128xf32>
    %108 = arith.mulf %103, %107 : vector<32x128xf32>
    %109 = vector.broadcast %3 : vector<1x128xf32> to vector<32x128xf32>
    %110 = arith.mulf %108, %109 : vector<32x128xf32>
    %111 = vector.broadcast %4 : vector<1x128xf32> to vector<32x128xf32>
    %112 = arith.addf %110, %111 : vector<32x128xf32>
    %113 = arith.truncf %112 : vector<32x128xf32> to vector<32x128xbf16>
    %c0_34 = arith.constant 0 : index
    %c0_35 = arith.constant 0 : index
    %114 = vector.load %arg9[%c0_34, %c0_35] : memref<128x512xbf16, #tpu.memory_space<vmem>>, vector<128x512xbf16>
    %cst_36 = arith.constant dense<0.000000e+00> : vector<32x512xf32>
    %115 = tpu.matmul %113, %114, %cst_36 {dimension_numbers = #tpu.dot_dimension_numbers<[1], [0], [0], [1], [0, 0, 1, 1], [], []>} : vector<32x128xbf16>, vector<128x512xbf16>, vector<32x512xf32> -> vector<32x512xf32>
    %116 = vector.broadcast %6 : vector<1x512xf32> to vector<32x512xf32>
    %117 = arith.addf %115, %116 : vector<32x512xf32>
    %cst_37 = arith.constant 5.000000e-01 : f32
    %118 = vector.broadcast %cst_37 : f32 to vector<32x512xf32>
    %119 = arith.mulf %118, %117 : vector<32x512xf32>
    %cst_38 = arith.constant 0.707106769 : f32
    %120 = vector.broadcast %cst_38 : f32 to vector<32x512xf32>
    %121 = arith.mulf %117, %120 : vector<32x512xf32>
    %122 = math.erf %121 : vector<32x512xf32>
    %cst_39 = arith.constant 1.000000e+00 : f32
    %123 = vector.broadcast %cst_39 : f32 to vector<32x512xf32>
    %124 = arith.addf %123, %122 : vector<32x512xf32>
    %125 = arith.mulf %119, %124 : vector<32x512xf32>
    %126 = arith.truncf %125 : vector<32x512xf32> to vector<32x512xbf16>
    %c0_40 = arith.constant 0 : index
    %c0_41 = arith.constant 0 : index
    %127 = vector.load %arg11[%c0_40, %c0_41] : memref<512x128xbf16, #tpu.memory_space<vmem>>, vector<512x128xbf16>
    %cst_42 = arith.constant dense<0.000000e+00> : vector<32x128xf32>
    %128 = tpu.matmul %126, %127, %cst_42 {dimension_numbers = #tpu.dot_dimension_numbers<[1], [0], [0], [1], [0, 0, 1, 1], [], []>} : vector<32x512xbf16>, vector<512x128xbf16>, vector<32x128xf32> -> vector<32x128xf32>
    %129 = vector.broadcast %7 : vector<1x128xf32> to vector<32x128xf32>
    %130 = arith.addf %128, %129 : vector<32x128xf32>
    %131 = arith.addf %90, %130 : vector<32x128xf32>
    %c0_43 = arith.constant 0 : index
    %c0_44 = arith.constant 0 : index
    %132 = vector.load %arg13[%c0_43, %c0_44] : memref<32x128xf32, #tpu.memory_space<vmem>>, vector<32x128xf32>
    tpu.vector_store %arg13[%c0_43, %c0_44], %131 {strides = array<i32>} : memref<32x128xf32, #tpu.memory_space<vmem>>, vector<32x128xf32>,
    return
  }
  func.func @transform_0(%arg0: i32) -> (i32, i32) {
    %c0_i32 = arith.constant 0 : i32
    %c0_i32_0 = arith.constant 0 : i32
    return %arg0, %c0_i32 : i32, i32
  }
  func.func @transform_1(%arg0: i32) -> (i32, i32) {
    %c0_i32 = arith.constant 0 : i32
    %c0_i32_0 = arith.constant 0 : i32
    %c0_i32_1 = arith.constant 0 : i32
    return %c0_i32, %c0_i32_0 : i32, i32
  }
  func.func @transform_2(%arg0: i32) -> (i32, i32) {
    %c0_i32 = arith.constant 0 : i32
    %c0_i32_0 = arith.constant 0 : i32
    %c0_i32_1 = arith.constant 0 : i32
    return %c0_i32, %c0_i32_0 : i32, i32
  }
  func.func @transform_3(%arg0: i32) -> (i32, i32) {
    %c0_i32 = arith.constant 0 : i32
    %c0_i32_0 = arith.constant 0 : i32
    %c0_i32_1 = arith.constant 0 : i32
    return %c0_i32, %c0_i32_0 : i32, i32
  }
  func.func @transform_4(%arg0: i32) -> (i32, i32) {
    %c0_i32 = arith.constant 0 : i32
    %c0_i32_0 = arith.constant 0 : i32
    %c0_i32_1 = arith.constant 0 : i32
    return %c0_i32, %c0_i32_0 : i32, i32
  }
  func.func @transform_5(%arg0: i32) -> (i32, i32) {
    %c0_i32 = arith.constant 0 : i32
    %c0_i32_0 = arith.constant 0 : i32
    %c0_i32_1 = arith.constant 0 : i32
    return %c0_i32, %c0_i32_0 : i32, i32
  }
  func.func @transform_6(%arg0: i32) -> (i32, i32) {
    %c0_i32 = arith.constant 0 : i32
    %c0_i32_0 = arith.constant 0 : i32
    %c0_i32_1 = arith.constant 0 : i32
    return %c0_i32, %c0_i32_0 : i32, i32
  }
  func.func @transform_7(%arg0: i32) -> (i32, i32) {
    %c0_i32 = arith.constant 0 : i32
    %c0_i32_0 = arith.constant 0 : i32
    %c0_i32_1 = arith.constant 0 : i32
    return %c0_i32, %c0_i32_0 : i32, i32
  }
  func.func @transform_8(%arg0: i32) -> (i32, i32) {
    %c0_i32 = arith.constant 0 : i32
    %c0_i32_0 = arith.constant 0 : i32
    %c0_i32_1 = arith.constant 0 : i32
    return %c0_i32, %c0_i32_0 : i32, i32
  }
  func.func @transform_9(%arg0: i32) -> (i32, i32) {
    %c0_i32 = arith.constant 0 : i32
    %c0_i32_0 = arith.constant 0 : i32
    %c0_i32_1 = arith.constant 0 : i32
    return %c0_i32, %c0_i32_0 : i32, i32
  }
  func.func @transform_10(%arg0: i32) -> (i32, i32) {
    %c0_i32 = arith.constant 0 : i32
    %c0_i32_0 = arith.constant 0 : i32
    %c0_i32_1 = arith.constant 0 : i32
    return %c0_i32, %c0_i32_0 : i32, i32
  }
  func.func @transform_11(%arg0: i32) -> (i32, i32) {
    %c0_i32 = arith.constant 0 : i32
    %c0_i32_0 = arith.constant 0 : i32
    %c0_i32_1 = arith.constant 0 : i32
    return %c0_i32, %c0_i32_0 : i32, i32
  }
  func.func @transform_12(%arg0: i32) -> (i32, i32) {
    %c0_i32 = arith.constant 0 : i32
    %c0_i32_0 = arith.constant 0 : i32
    return %arg0, %c0_i32 : i32, i32
  }
}

</mosaic_0001>

<llo_original>
// kernel: tpu_custom_call.1
$region0: #{tpu_custom_call.1}
  #allocation0 [shape = 'u32[]', space=smem, size = 0x4, offset = 0x4, fixed_abs, tag = 'smem constant byte address 0x4 - core index']
  #allocation1 [shape = 'u32[72,128]{1,0:T(1,128)}', space=vmem, size = 0x9000, scoped, tag = 'internal scratch']
  %s0 = inlined_call_operand.hbm [shape: f32[32,128], index: 0, kind: input, shape index: {}]
  %s1 = inlined_call_operand.hbm [shape: f32[1,128], index: 1, kind: input, shape index: {}]
  %s2 = inlined_call_operand.vmem [shape: f32[1,128], index: 2, kind: input, shape index: {}]
  %s3 = inlined_call_operand.hbm [shape: bf16[128,384], index: 3, kind: input, shape index: {}]
  %s4 = inlined_call_operand.hbm [shape: bf16[128,128], index: 4, kind: input, shape index: {}]
  %s5 = inlined_call_operand.vmem [shape: f32[1,128], index: 5, kind: input, shape index: {}]
  %s6 = inlined_call_operand.vmem [shape: f32[1,128], index: 6, kind: input, shape index: {}]
  %s7 = inlined_call_operand.hbm [shape: f32[1,128], index: 7, kind: input, shape index: {}]
  %s8 = inlined_call_operand.hbm [shape: bf16[128,512], index: 8, kind: input, shape index: {}]
  %s9 = inlined_call_operand.vmem [shape: f32[1,512], index: 9, kind: input, shape index: {}]
  %s10 = inlined_call_operand.hbm [shape: bf16[512,128], index: 10, kind: input, shape index: {}]
  %s11 = inlined_call_operand.vmem [shape: f32[1,128], index: 11, kind: input, shape index: {}]
  %s12 = inlined_call_operand.hbm [shape: f32[32,128], index: 12, kind: output, shape index: {}]
  %s13 = sld [smem:[#allocation0]]
  $region86: #{tpu_custom_call.1} parent=0
    _
  %s15 = ssub.s32 1, %s13
  %s16 = scalar_select 0, %s15, %s13
  $region1: #{tpu_custom_call.1} parent=0
    #allocation2 [shape = 'u8[16384]{0}', space=vmem, size = 0x4000, scoped, tag = 'input window, operand 0, single buffered']
    #allocation3 [shape = 's32[1]{0}', space=sflag, size = 0x4, scoped, tag = 'scoped memory for tpu_custom_call.1']
    #allocation4 [shape = 's32[1]{0}', space=sflag, size = 0x4, scoped, tag = 'scoped memory for tpu_custom_call.1']
    #allocation5 [shape = 'u8[512]{0}', space=vmem, size = 0x400, scoped, tag = 'input window, operand 1, single buffered']
    #allocation6 [shape = 's32[1]{0}', space=sflag, size = 0x4, scoped, tag = 'scoped memory for tpu_custom_call.1']
    #allocation7 [shape = 'u8[98304]{0}', space=vmem, size = 0x18000, scoped, tag = 'input window, operand 3, single buffered']
    #allocation8 [shape = 'u8[32768]{0}', space=vmem, size = 0x8000, scoped, tag = 'input window, operand 4, single buffered']
    #allocation9 [shape = 's32[1]{0}', space=sflag, size = 0x4, scoped, tag = 'scoped memory for tpu_custom_call.1']
    #allocation10 [shape = 'u8[512]{0}', space=vmem, size = 0x400, scoped, tag = 'input window, operand 7, single buffered']
    #allocation11 [shape = 'u8[131072]{0}', space=vmem, size = 0x20000, scoped, tag = 'input window, operand 8, single buffered']
    #allocation12 [shape = 's32[1]{0}', space=sflag, size = 0x4, scoped, tag = 'scoped memory for tpu_custom_call.1']
    #allocation13 [shape = 'u8[131072]{0}', space=vmem, size = 0x20000, scoped, tag = 'input window, operand 10, single buffered']
    #allocation14 [shape = 'u8[16384]{0}', space=vmem, size = 0x4000, scoped, tag = 'output window, operand 0, single buffered']
    %17 = vsyncpa [#allocation3], 0
    %18 = vsyncpa [#allocation6], 0
    %19 = vsyncpa [#allocation9], 0
    %20 = vsyncpa [#allocation12], 0
    %21 = vsyncpa [#allocation4], 0
    // Predicated region
    $region2: #{tpu_custom_call.1} parent=1 // pred_check
      _
    $region3: #{tpu_custom_call.1} parent=1 // pred_check_branch
      %23 = sbr.rel (0) target = $region5
    $region4: #{tpu_custom_call.1} parent=1 // pred_region
      %25 = vsyncadd [#allocation3], 0
      %s26 = sshll.u32 %s0, 4
      %s27 = int_to_ptr.hbm [resolvable:$true] %s26
      %s28 = sshll.u32 [#allocation2], 4
      %s29 = int_to_ptr.vmem [resolvable:$true] %s28
      %34 = dma.hbm_to_vmem [thread:$0]  %s27, 512, %s29, [#allocation3], 128, 128, 8
    $region5: #{tpu_custom_call.1} parent=1 // pred_fallthru
      _
    // Predicated region
    $region6: #{tpu_custom_call.1} parent=1 // pred_check
      _
    $region7: #{tpu_custom_call.1} parent=1 // pred_check_branch
      %36 = sbr.rel (0) target = $region9
    $region8: #{tpu_custom_call.1} parent=1 // pred_region
      %38 = vsyncadd [#allocation6], 0
      %s40 = sshll.u32 %s1, 4
      %s41 = int_to_ptr.hbm [resolvable:$true] %s40
      %s42 = sshll.u32 [#allocation5], 4
      %s43 = int_to_ptr.vmem [resolvable:$true] %s42
      %45 = dma.hbm_to_vmem [thread:$0]  %s41, 16, %s43, [#allocation6]
    $region9: #{tpu_custom_call.1} parent=1 // pred_fallthru
      _
    // Predicated region
    $region10: #{tpu_custom_call.1} parent=1 // pred_check
      _
    $region11: #{tpu_custom_call.1} parent=1 // pred_check_branch
      %47 = sbr.rel (0) target = $region13
    $region12: #{tpu_custom_call.1} parent=1 // pred_region
      _
    $region13: #{tpu_custom_call.1} parent=1 // pred_fallthru
      _
    // Predicated region
    $region14: #{tpu_custom_call.1} parent=1 // pred_check
      _
    $region15: #{tpu_custom_call.1} parent=1 // pred_check_branch
      %49 = sbr.rel (0) target = $region17
    $region16: #{tpu_custom_call.1} parent=1 // pred_region
      %51 = vsyncadd [#allocation6], 0
      %s52 = sshll.u32 %s3, 4
      %s53 = int_to_ptr.hbm [resolvable:$true] %s52
      %s54 = sshll.u32 [#allocation7], 4
      %s55 = int_to_ptr.vmem [resolvable:$true] %s54
      %60 = dma.hbm_to_vmem [thread:$0]  %s53, 3072, %s55, [#allocation6], 192, 192, 12
    $region17: #{tpu_custom_call.1} parent=1 // pred_fallthru
      _
    // Predicated region
    $region18: #{tpu_custom_call.1} parent=1 // pred_check
      _
    $region19: #{tpu_custom_call.1} parent=1 // pred_check_branch
      %62 = sbr.rel (0) target = $region21
    $region20: #{tpu_custom_call.1} parent=1 // pred_region
      %64 = vsyncadd [#allocation9], 0
      %s65 = sshll.u32 %s4, 4
      %s66 = int_to_ptr.hbm [resolvable:$true] %s65
      %s67 = sshll.u32 [#allocation8], 4
      %s68 = int_to_ptr.vmem [resolvable:$true] %s67
      %73 = dma.hbm_to_vmem [thread:$0]  %s66, 1024, %s68, [#allocation9], 64, 64, 4
    $region21: #{tpu_custom_call.1} parent=1 // pred_fallthru
      _
    // Predicated region
    $region22: #{tpu_custom_call.1} parent=1 // pred_check
      _
    $region23: #{tpu_custom_call.1} parent=1 // pred_check_branch
      %75 = sbr.rel (0) target = $region25
    $region24: #{tpu_custom_call.1} parent=1 // pred_region
      _
    $region25: #{tpu_custom_call.1} parent=1 // pred_fallthru
      _
    // Predicated region
    $region26: #{tpu_custom_call.1} parent=1 // pred_check
      _
    $region27: #{tpu_custom_call.1} parent=1 // pred_check_branch
      %77 = sbr.rel (0) target = $region29
    $region28: #{tpu_custom_call.1} parent=1 // pred_region
      _
    $region29: #{tpu_custom_call.1} parent=1 // pred_fallthru
      _
    // Predicated region
    $region30: #{tpu_custom_call.1} parent=1 // pred_check
      _
    $region31: #{tpu_custom_call.1} parent=1 // pred_check_branch
      %79 = sbr.rel (0) target = $region33
    $region32: #{tpu_custom_call.1} parent=1 // pred_region
      %81 = vsyncadd [#allocation9], 0
      %s83 = sshll.u32 %s7, 4
      %s84 = int_to_ptr.hbm [resolvable:$true] %s83
      %s85 = sshll.u32 [#allocation10], 4
      %s86 = int_to_ptr.vmem [resolvable:$true] %s85
      %88 = dma.hbm_to_vmem [thread:$0]  %s84, 16, %s86, [#allocation9]
    $region33: #{tpu_custom_call.1} parent=1 // pred_fallthru
      _
    // Predicated region
    $region34: #{tpu_custom_call.1} parent=1 // pred_check
      _
    $region35: #{tpu_custom_call.1} parent=1 // pred_check_branch
      %90 = sbr.rel (0) target = $region37
    $region36: #{tpu_custom_call.1} parent=1 // pred_region
      %92 = vsyncadd [#allocation12], 0
      %s93 = sshll.u32 %s8, 4
      %s94 = int_to_ptr.hbm [resolvable:$true] %s93
      %s95 = sshll.u32 [#allocation11], 4
      %s96 = int_to_ptr.vmem [resolvable:$true] %s95
      %101 = dma.hbm_to_vmem [thread:$0]  %s94, 4096, %s96, [#allocation12], 256, 256, 16
    $region37: #{tpu_custom_call.1} parent=1 // pred_fallthru
      _
    // Predicated region
    $region38: #{tpu_custom_call.1} parent=1 // pred_check
      _
    $region39: #{tpu_custom_call.1} parent=1 // pred_check_branch
      %103 = sbr.rel (0) target = $region41
    $region40: #{tpu_custom_call.1} parent=1 // pred_region
      _
    $region41: #{tpu_custom_call.1} parent=1 // pred_fallthru
      _
    // Predicated region
    $region42: #{tpu_custom_call.1} parent=1 // pred_check
      _
    $region43: #{tpu_custom_call.1} parent=1 // pred_check_branch
      %105 = sbr.rel (0) target = $region45
    $region44: #{tpu_custom_call.1} parent=1 // pred_region
      %107 = vsyncadd [#allocation12], 0
      %s108 = sshll.u32 %s10, 4
      %s109 = int_to_ptr.hbm [resolvable:$true] %s108
      %s110 = sshll.u32 [#allocation13], 4
      %s111 = int_to_ptr.vmem [resolvable:$true] %s110
      %116 = dma.hbm_to_vmem [thread:$0]  %s109, 4096, %s111, [#allocation12], 64, 64, 4
    $region45: #{tpu_custom_call.1} parent=1 // pred_fallthru
      _
    // Predicated region
    $region46: #{tpu_custom_call.1} parent=1 // pred_check
      _
    $region47: #{tpu_custom_call.1} parent=1 // pred_check_branch
      %118 = sbr.rel (0) target = $region49
    $region48: #{tpu_custom_call.1} parent=1 // pred_region
      _
    $region49: #{tpu_custom_call.1} parent=1 // pred_fallthru
      _
    // Predicated region
    $region50: #{tpu_custom_call.1} parent=1 // pred_check
      _
    $region51: #{tpu_custom_call.1} parent=1 // pred_check_branch
      %120 = sbr.rel (0) target = $region53
    $region52: #{tpu_custom_call.1} parent=1 // pred_region
      %122 = dma.done [#allocation3], 512
    $region53: #{tpu_custom_call.1} parent=1 // pred_fallthru
      _
    // Predicated region
    $region54: #{tpu_custom_call.1} parent=1 // pred_check
      _
    $region55: #{tpu_custom_call.1} parent=1 // pred_check_branch
      %124 = sbr.rel (0) target = $region57
    $region56: #{tpu_custom_call.1} parent=1 // pred_region
      %126 = dma.done [#allocation6], 16
    $region57: #{tpu_custom_call.1} parent=1 // pred_fallthru
      _
    // Predicated region
    $region58: #{tpu_custom_call.1} parent=1 // pred_check
      _
    $region59: #{tpu_custom_call.1} parent=1 // pred_check_branch
      %128 = sbr.rel (0) target = $region61
    $region60: #{tpu_custom_call.1} parent=1 // pred_region
      %130 = dma.done [#allocation6], 3072
    $region61: #{tpu_custom_call.1} parent=1 // pred_fallthru
      _
    // Predicated region
    $region62: #{tpu_custom_call.1} parent=1 // pred_check
      _
    $region63: #{tpu_custom_call.1} parent=1 // pred_check_branch
      %132 = sbr.rel (0) target = $region65
    $region64: #{tpu_custom_call.1} parent=1 // pred_region
      %134 = dma.done [#allocation9], 1024
    $region65: #{tpu_custom_call.1} parent=1 // pred_fallthru
      _
    // Predicated region
    $region66: #{tpu_custom_call.1} parent=1 // pred_check
      _
    $region67: #{tpu_custom_call.1} parent=1 // pred_check_branch
      %136 = sbr.rel (0) target = $region69
    $region68: #{tpu_custom_call.1} parent=1 // pred_region
      %138 = dma.done [#allocation9], 16
    $region69: #{tpu_custom_call.1} parent=1 // pred_fallthru
      _
    // Predicated region
    $region70: #{tpu_custom_call.1} parent=1 // pred_check
      _
    $region71: #{tpu_custom_call.1} parent=1 // pred_check_branch
      %140 = sbr.rel (0) target = $region73
    $region72: #{tpu_custom_call.1} parent=1 // pred_region
      %142 = dma.done [#allocation12], 4096
    $region73: #{tpu_custom_call.1} parent=1 // pred_fallthru
      _
    // Predicated region
    $region74: #{tpu_custom_call.1} parent=1 // pred_check
      _
    $region75: #{tpu_custom_call.1} parent=1 // pred_check_branch
      %144 = sbr.rel (0) target = $region77
    $region76: #{tpu_custom_call.1} parent=1 // pred_region
      %146 = dma.done [#allocation12], 4096
    $region77: #{tpu_custom_call.1} parent=1 // pred_fallthru
      _
    %v148 = vld [vmem:[#allocation2] sm:$0xff]
    %v149 = vld [vmem:[#allocation2 + $0x8] sm:$0xff]
    %v150 = vld [vmem:[#allocation2 + $0x10] sm:$0xff]
    %v151 = vld [vmem:[#allocation2 + $0x18] sm:$0xff]
    %v152 = vld [vmem:[#allocation5] sm:$0x1]
    %v153 = vld [vmem:[%s2] sm:$0x1]
    %v154 = vld [vmem:[%s6] sm:$0x1]
    %v155 = vld [vmem:[#allocation10] sm:$0x1]
    %v156 = vld [vmem:[%s5] sm:$0x1]
    %v157 = vld [vmem:[%s9] sm:$0xf]
    %v158 = vld [vmem:[%s11] sm:$0x1]
    %159 = vadd.xlane.f32.xlu0 %v148
    %v160 = vpop.xlane.xlu0 %159
    %161 = vadd.xlane.f32.xlu0 %v149
    %v162 = vpop.xlane.xlu0 %161
    %163 = vadd.xlane.f32.xlu0 %v150
    %v164 = vpop.xlane.xlu0 %163
    %165 = vadd.xlane.f32.xlu0 %v151
    %v166 = vpop.xlane.xlu0 %165
    %v167 = vrcp.pop 128.0
    %v168 = vmul.f32 128.0, %v167
    %v169 = vsub.f32 1.0, %v168
    %v170 = vmul.f32 %v167, %v169
    %v171 = vadd.f32 %v167, %v170
    %vm172 = vweird.f32 %v167
    %v173 = vsel %vm172, %v167, %v171
    %v174 = vmul.f32 %v160, %v173
    %v175 = vmul.f32 %v162, %v173
    %v176 = vmul.f32 %v164, %v173
    %v177 = vmul.f32 %v166, %v173
    %v178 = vsub.f32 %v148, %v174
    %v179 = vsub.f32 %v149, %v175
    %v180 = vsub.f32 %v150, %v176
    %v181 = vsub.f32 %v151, %v177
    %v182 = vmul.f32 %v178, %v178
    %v183 = vmul.f32 %v179, %v179
    %v184 = vmul.f32 %v180, %v180
    %v185 = vmul.f32 %v181, %v181
    %186 = vadd.xlane.f32.xlu0 %v182
    %v187 = vpop.xlane.xlu0 %186
    %188 = vadd.xlane.f32.xlu0 %v183
    %v189 = vpop.xlane.xlu0 %188
    %190 = vadd.xlane.f32.xlu0 %v184
    %v191 = vpop.xlane.xlu0 %190
    %192 = vadd.xlane.f32.xlu0 %v185
    %v193 = vpop.xlane.xlu0 %192
    %v194 = vmul.f32 %v187, %v173
    %v195 = vmul.f32 %v189, %v173
    %v196 = vmul.f32 %v191, %v173
    %v197 = vmul.f32 %v193, %v173
    %v198 = vadd.f32 %v194, 1e-05
    %v199 = vadd.f32 %v195, 1e-05
    %v200 = vadd.f32 %v196, 1e-05
    %v201 = vadd.f32 %v197, 1e-05
    %v202 = vrsqrt.pop %v198
    %v203 = vmul.f32 %v202, %v198
    %v204 = vmul.f32 %v203, %v202
    %v205 = vmul.f32 0.5, %v204
    %v206 = vsub.f32 1.5, %v205
    %v207 = vmul.f32 %v202, %v206
    %vm208 = vweird.f32 %v198
    %vm209 = vweird.f32 %v202
    %vm210 = vmor %vm208, %vm209
    %v211 = vsel %vm210, %v202, %v207
    %v212 = vrsqrt.pop %v199
    %v213 = vmul.f32 %v212, %v199
    %v214 = vmul.f32 %v213, %v212
    %v215 = vmul.f32 0.5, %v214
    %v216 = vsub.f32 1.5, %v215
    %v217 = vmul.f32 %v212, %v216
    %vm218 = vweird.f32 %v199
    %vm219 = vweird.f32 %v212
    %vm220 = vmor %vm218, %vm219
    %v221 = vsel %vm220, %v212, %v217
    %v222 = vrsqrt.pop %v200
    %v223 = vmul.f32 %v222, %v200
    %v224 = vmul.f32 %v223, %v222
    %v225 = vmul.f32 0.5, %v224
    %v226 = vsub.f32 1.5, %v225
    %v227 = vmul.f32 %v222, %v226
    %vm228 = vweird.f32 %v200
    %vm229 = vweird.f32 %v222
    %vm230 = vmor %vm228, %vm229
    %v231 = vsel %vm230, %v222, %v227
    %v232 = vrsqrt.pop %v201
    %v233 = vmul.f32 %v232, %v201
    %v234 = vmul.f32 %v233, %v232
    %v235 = vmul.f32 0.5, %v234
    %v236 = vsub.f32 1.5, %v235
    %v237 = vmul.f32 %v232, %v236
    %vm238 = vweird.f32 %v201
    %vm239 = vweird.f32 %v232
    %vm240 = vmor %vm238, %vm239
    %v241 = vsel %vm240, %v232, %v237
    %v242 = vmul.f32 %v178, %v211
    %v243 = vmul.f32 %v179, %v221
    %v244 = vmul.f32 %v180, %v231
    %v245 = vmul.f32 %v181, %v241
    %v247 = vperm.slane %v152, 0
    %v249 = vmul.f32 %v242, %v247
    %v250 = vmul.f32 %v243, %v247
    %v251 = vmul.f32 %v244, %v247
    %v252 = vmul.f32 %v245, %v247
    %v254 = vperm.slane %v153, 0
    %v256 = vadd.f32 %v249, %v254
    %v257 = vadd.f32 %v250, %v254
    %v258 = vadd.f32 %v251, %v254
    %v259 = vadd.f32 %v252, %v254
    %v260 = vpack.c.bf16 %v257, %v256
    %v261 = vpack.c.bf16 %v259, %v258
    %v262 = vld [vmem:[#allocation7] sm:$0xff]
    %v263 = vld [vmem:[#allocation7 + $0x8] sm:$0xf]
    %v264 = vld [vmem:[#allocation7 + $0xc] sm:$0xff]
    %v265 = vld [vmem:[#allocation7 + $0x14] sm:$0xf]
    %v266 = vld [vmem:[#allocation7 + $0x18] sm:$0xff]
    %v267 = vld [vmem:[#allocation7 + $0x20] sm:$0xf]
    %v268 = vld [vmem:[#allocation7 + $0x24] sm:$0xff]
    %v269 = vld [vmem:[#allocation7 + $0x2c] sm:$0xf]
    %v270 = vld [vmem:[#allocation7 + $0x30] sm:$0xff]
    %v271 = vld [vmem:[#allocation7 + $0x38] sm:$0xf]
    %v272 = vld [vmem:[#allocation7 + $0x3c] sm:$0xff]
    %v273 = vld [vmem:[#allocation7 + $0x44] sm:$0xf]
    %v274 = vld [vmem:[#allocation7 + $0x48] sm:$0xff]
    %v275 = vld [vmem:[#allocation7 + $0x50] sm:$0xf]
    %v276 = vld [vmem:[#allocation7 + $0x54] sm:$0xff]
    %v277 = vld [vmem:[#allocation7 + $0x5c] sm:$0xf]
    %v278 = vld [vmem:[#allocation7 + $0x60] sm:$0xff]
    %v279 = vld [vmem:[#allocation7 + $0x68] sm:$0xf]
    %v280 = vld [vmem:[#allocation7 + $0x6c] sm:$0xff]
    %v281 = vld [vmem:[#allocation7 + $0x74] sm:$0xf]
    %v282 = vld [vmem:[#allocation7 + $0x78] sm:$0xff]
    %v283 = vld [vmem:[#allocation7 + $0x80] sm:$0xf]
    %v284 = vld [vmem:[#allocation7 + $0x84] sm:$0xff]
    %v285 = vld [vmem:[#allocation7 + $0x8c] sm:$0xf]
    %v286 = vld [vmem:[#allocation7 + $0x90] sm:$0xff]
    %v287 = vld [vmem:[#allocation7 + $0x98] sm:$0xf]
    %v288 = vld [vmem:[#allocation7 + $0x9c] sm:$0xff]
    %v289 = vld [vmem:[#allocation7 + $0xa4] sm:$0xf]
    %v290 = vld [vmem:[#allocation7 + $0xa8] sm:$0xff]
    %v291 = vld [vmem:[#allocation7 + $0xb0] sm:$0xf]
    %v292 = vld [vmem:[#allocation7 + $0xb4] sm:$0xff]
    %v293 = vld [vmem:[#allocation7 + $0xbc] sm:$0xf]
    %v326 = vunpack.c.l.b16 %v262
    %v327 = vunpack.c.h.b16 %v262
    %v328 = vunpack.c.l.b16 %v263
    %v329 = vunpack.c.l.b16 %v264
    %v330 = vunpack.c.h.b16 %v264
    %v331 = vunpack.c.l.b16 %v265
    %v332 = vunpack.c.l.b16 %v266
    %v333 = vunpack.c.h.b16 %v266
    %v334 = vunpack.c.l.b16 %v267
    %v335 = vunpack.c.l.b16 %v268
    %v336 = vunpack.c.h.b16 %v268
    %v337 = vunpack.c.l.b16 %v269
    %v338 = vunpack.c.l.b16 %v270
    %v339 = vunpack.c.h.b16 %v270
    %v340 = vunpack.c.l.b16 %v271
    %v341 = vunpack.c.l.b16 %v272
    %v342 = vunpack.c.h.b16 %v272
    %v343 = vunpack.c.l.b16 %v273
    %v344 = vunpack.c.l.b16 %v274
    %v345 = vunpack.c.h.b16 %v274
    %v346 = vunpack.c.l.b16 %v275
    %v347 = vunpack.c.l.b16 %v276
    %v348 = vunpack.c.h.b16 %v276
    %v349 = vunpack.c.l.b16 %v277
    %v350 = vunpack.c.l.b16 %v278
    %v351 = vunpack.c.h.b16 %v278
    %v352 = vunpack.c.l.b16 %v279
    %v353 = vunpack.c.l.b16 %v280
    %v354 = vunpack.c.h.b16 %v280
    %v355 = vunpack.c.l.b16 %v281
    %v356 = vunpack.c.l.b16 %v282
    %v357 = vunpack.c.h.b16 %v282
    %v358 = vunpack.c.l.b16 %v283
    %v359 = vunpack.c.l.b16 %v284
    %v360 = vunpack.c.h.b16 %v284
    %v361 = vunpack.c.l.b16 %v285
    %v362 = vunpack.c.l.b16 %v286
    %v363 = vunpack.c.h.b16 %v286
    %v364 = vunpack.c.l.b16 %v287
    %v365 = vunpack.c.l.b16 %v288
    %v366 = vunpack.c.h.b16 %v288
    %v367 = vunpack.c.l.b16 %v289
    %v368 = vunpack.c.l.b16 %v290
    %v369 = vunpack.c.h.b16 %v290
    %v370 = vunpack.c.l.b16 %v291
    %v371 = vunpack.c.l.b16 %v292
    %v372 = vunpack.c.h.b16 %v292
    %v373 = vunpack.c.l.b16 %v293
    %v374 = vpack.c.b16 %v329, %v326
    %v375 = vpack.c.b16 %v330, %v327
    %v376 = vpack.c.b16 %v331, %v328
    %v377 = vpack.c.b16 %v335, %v332
    %v378 = vpack.c.b16 %v336, %v333
    %v379 = vpack.c.b16 %v337, %v334
    %v380 = vpack.c.b16 %v341, %v338
    %v381 = vpack.c.b16 %v342, %v339
    %v382 = vpack.c.b16 %v343, %v340
    %v383 = vpack.c.b16 %v347, %v344
    %v384 = vpack.c.b16 %v348, %v345
    %v385 = vpack.c.b16 %v349, %v346
    %v386 = vpack.c.b16 %v353, %v350
    %v387 = vpack.c.b16 %v354, %v351
    %v388 = vpack.c.b16 %v355, %v352
    %v389 = vpack.c.b16 %v359, %v356
    %v390 = vpack.c.b16 %v360, %v357
    %v391 = vpack.c.b16 %v361, %v358
    %v392 = vpack.c.b16 %v365, %v362
    %v393 = vpack.c.b16 %v366, %v363
    %v394 = vpack.c.b16 %v367, %v364
    %v395 = vpack.c.b16 %v371, %v368
    %v396 = vpack.c.b16 %v372, %v369
    %v397 = vpack.c.b16 %v373, %v370
    %422 = vmatpush.bf16.msra.mxu0 %v395
    %423 = vmatpush.bf16.msra.mxu0 %v392
    %424 = vmatpush.bf16.msra.mxu0 %v389
    %425 = vmatpush.bf16.msra.mxu0 %v386
    %426 = vmatpush.bf16.msra.mxu0 %v383
    %427 = vmatpush.bf16.msra.mxu0 %v380
    %428 = vmatpush.bf16.msra.mxu0 %v377
    %429 = vmatpush.bf16.msra.mxu0 %v374
    %430 = vmatmul.bf16.gmra.mxu0 %v260
    %v431 = vpop.f32.mrf.mxu0
    %v432 = vadd.f32 0.0, %v431
    %v433 = vpop.f32.mrf.mxu0
    %v434 = vadd.f32 0.0, %v433
    %435 = vmatmul.bf16.gmra.mxu0 %v261
    %v436 = vpop.f32.mrf.mxu0
    %v437 = vadd.f32 0.0, %v436
    %v438 = vpop.f32.mrf.mxu0
    %v439 = vadd.f32 0.0, %v438
    %440 = vdwg.mxu0
    %441 = vmatpush.bf16.msra.mxu0 %v396
    %442 = vmatpush.bf16.msra.mxu0 %v393
    %443 = vmatpush.bf16.msra.mxu0 %v390
    %444 = vmatpush.bf16.msra.mxu0 %v387
    %445 = vmatpush.bf16.msra.mxu0 %v384
    %446 = vmatpush.bf16.msra.mxu0 %v381
    %447 = vmatpush.bf16.msra.mxu0 %v378
    %448 = vmatpush.bf16.msra.mxu0 %v375
    %449 = vmatmul.bf16.gmra.mxu0 %v260
    %v450 = vpop.f32.mrf.mxu0
    %v451 = vadd.f32 0.0, %v450
    %v452 = vpop.f32.mrf.mxu0
    %v453 = vadd.f32 0.0, %v452
    %454 = vmatmul.bf16.gmra.mxu0 %v261
    %v455 = vpop.f32.mrf.mxu0
    %v456 = vadd.f32 0.0, %v455
    %v457 = vpop.f32.mrf.mxu0
    %v458 = vadd.f32 0.0, %v457
    %459 = vdwg.mxu0
    %460 = vmatpush.bf16.msra.mxu0 %v397
    %461 = vmatpush.bf16.msra.mxu0 %v394
    %462 = vmatpush.bf16.msra.mxu0 %v391
    %463 = vmatpush.bf16.msra.mxu0 %v388
    %464 = vmatpush.bf16.msra.mxu0 %v385
    %465 = vmatpush.bf16.msra.mxu0 %v382
    %466 = vmatpush.bf16.msra.mxu0 %v379
    %467 = vmatpush.bf16.msra.mxu0 %v376
    %468 = vmatmul.bf16.gmra.mxu0 %v260
    %v469 = vpop.f32.mrf.mxu0
    %v470 = vadd.f32 0.0, %v469
    %v471 = vpop.f32.mrf.mxu0
    %v472 = vadd.f32 0.0, %v471
    %473 = vmatmul.bf16.gmra.mxu0 %v261
    %v474 = vpop.f32.mrf.mxu0
    %v475 = vadd.f32 0.0, %v474
    %v476 = vpop.f32.mrf.mxu0
    %v477 = vadd.f32 0.0, %v476
    %478 = vdwg.mxu0
    %483 = vrot.lane.b32.xlu0 %v432, 96
    %v484 = vpop.permute.xlu0 %483
    %485 = vrot.lane.b32.xlu0 %v434, 96
    %v486 = vpop.permute.xlu0 %485
    %487 = vrot.lane.b32.xlu0 %v437, 96
    %v488 = vpop.permute.xlu0 %487
    %489 = vrot.lane.b32.xlu0 %v439, 96
    %v490 = vpop.permute.xlu0 %489
    %495 = vrot.lane.b32.xlu0 %v432, 64
    %v496 = vpop.permute.xlu0 %495
    %497 = vrot.lane.b32.xlu0 %v434, 64
    %v498 = vpop.permute.xlu0 %497
    %499 = vrot.lane.b32.xlu0 %v437, 64
    %v500 = vpop.permute.xlu0 %499
    %501 = vrot.lane.b32.xlu0 %v439, 64
    %v502 = vpop.permute.xlu0 %501
    %507 = vrot.lane.b32.xlu0 %v432, 32
    %v508 = vpop.permute.xlu0 %507
    %509 = vrot.lane.b32.xlu0 %v434, 32
    %v510 = vpop.permute.xlu0 %509
    %511 = vrot.lane.b32.xlu0 %v437, 32
    %v512 = vpop.permute.xlu0 %511
    %513 = vrot.lane.b32.xlu0 %v439, 32
    %v514 = vpop.permute.xlu0 %513
    %v519 = vpack.c.bf16 %v432, %v432
    %v520 = vpack.c.bf16 %v434, %v434
    %v521 = vpack.c.bf16 %v437, %v437
    %v522 = vpack.c.bf16 %v439, %v439
    %v523 = vpack.c.bf16 %v484, %v484
    %v524 = vpack.c.bf16 %v486, %v486
    %v525 = vpack.c.bf16 %v488, %v488
    %v526 = vpack.c.bf16 %v490, %v490
    %v527 = vpack.c.bf16 %v496, %v496
    %v528 = vpack.c.bf16 %v498, %v498
    %v529 = vpack.c.bf16 %v500, %v500
    %v530 = vpack.c.bf16 %v502, %v502
    %v531 = vpack.c.bf16 %v508, %v508
    %v532 = vpack.c.bf16 %v510, %v510
    %v533 = vpack.c.bf16 %v512, %v512
    %v534 = vpack.c.bf16 %v514, %v514
    %539 = vrot.lane.b32.xlu0 %v451, 96
    %v540 = vpop.permute.xlu0 %539
    %541 = vrot.lane.b32.xlu0 %v453, 96
    %v542 = vpop.permute.xlu0 %541
    %543 = vrot.lane.b32.xlu0 %v456, 96
    %v544 = vpop.permute.xlu0 %543
    %545 = vrot.lane.b32.xlu0 %v458, 96
    %v546 = vpop.permute.xlu0 %545
    %551 = vrot.lane.b32.xlu0 %v451, 64
    %v552 = vpop.permute.xlu0 %551
    %553 = vrot.lane.b32.xlu0 %v453, 64
    %v554 = vpop.permute.xlu0 %553
    %555 = vrot.lane.b32.xlu0 %v456, 64
    %v556 = vpop.permute.xlu0 %555
    %557 = vrot.lane.b32.xlu0 %v458, 64
    %v558 = vpop.permute.xlu0 %557
    %563 = vrot.lane.b32.xlu0 %v451, 32
    %v564 = vpop.permute.xlu0 %563
    %565 = vrot.lane.b32.xlu0 %v453, 32
    %v566 = vpop.permute.xlu0 %565
    %567 = vrot.lane.b32.xlu0 %v456, 32
    %v568 = vpop.permute.xlu0 %567
    %569 = vrot.lane.b32.xlu0 %v458, 32
    %v570 = vpop.permute.xlu0 %569
    %v575 = vpack.c.bf16 %v451, %v451
    %v576 = vpack.c.bf16 %v453, %v453
    %v577 = vpack.c.bf16 %v456, %v456
    %v578 = vpack.c.bf16 %v458, %v458
    %v579 = vpack.c.bf16 %v540, %v540
    %v580 = vpack.c.bf16 %v542, %v542
    %v581 = vpack.c.bf16 %v544, %v544
    %v582 = vpack.c.bf16 %v546, %v546
    %v583 = vpack.c.bf16 %v552, %v552
    %v584 = vpack.c.bf16 %v554, %v554
    %v585 = vpack.c.bf16 %v556, %v556
    %v586 = vpack.c.bf16 %v558, %v558
    %v587 = vpack.c.bf16 %v564, %v564
    %v588 = vpack.c.bf16 %v566, %v566
    %v589 = vpack.c.bf16 %v568, %v568
    %v590 = vpack.c.bf16 %v570, %v570
    %595 = vrot.lane.b32.xlu0 %v470, 96
    %v596 = vpop.permute.xlu0 %595
    %597 = vrot.lane.b32.xlu0 %v472, 96
    %v598 = vpop.permute.xlu0 %597
    %599 = vrot.lane.b32.xlu0 %v475, 96
    %v600 = vpop.permute.xlu0 %599
    %601 = vrot.lane.b32.xlu0 %v477, 96
    %v602 = vpop.permute.xlu0 %601
    %607 = vrot.lane.b32.xlu0 %v470, 64
    %v608 = vpop.permute.xlu0 %607
    %609 = vrot.lane.b32.xlu0 %v472, 64
    %v610 = vpop.permute.xlu0 %609
    %611 = vrot.lane.b32.xlu0 %v475, 64
    %v612 = vpop.permute.xlu0 %611
    %613 = vrot.lane.b32.xlu0 %v477, 64
    %v614 = vpop.permute.xlu0 %613
    %619 = vrot.lane.b32.xlu0 %v470, 32
    %v620 = vpop.permute.xlu0 %619
    %621 = vrot.lane.b32.xlu0 %v472, 32
    %v622 = vpop.permute.xlu0 %621
    %623 = vrot.lane.b32.xlu0 %v475, 32
    %v624 = vpop.permute.xlu0 %623
    %625 = vrot.lane.b32.xlu0 %v477, 32
    %v626 = vpop.permute.xlu0 %625
    %v631 = vpack.c.bf16 %v470, %v470
    %v632 = vpack.c.bf16 %v472, %v472
    %v633 = vpack.c.bf16 %v475, %v475
    %v634 = vpack.c.bf16 %v477, %v477
    %v635 = vpack.c.bf16 %v596, %v596
    %v636 = vpack.c.bf16 %v598, %v598
    %v637 = vpack.c.bf16 %v600, %v600
    %v638 = vpack.c.bf16 %v602, %v602
    %v639 = vpack.c.bf16 %v608, %v608
    %v640 = vpack.c.bf16 %v610, %v610
    %v641 = vpack.c.bf16 %v612, %v612
    %v642 = vpack.c.bf16 %v614, %v614
    %v643 = vpack.c.bf16 %v620, %v620
    %v644 = vpack.c.bf16 %v622, %v622
    %v645 = vpack.c.bf16 %v624, %v624
    %v646 = vpack.c.bf16 %v626, %v626
    %v649 = vunpack.c.l.b16 %v519
    %v650 = vunpack.c.l.b16 %v520
    %v651 = vpack.c.b16 %v650, %v649
    %v654 = vunpack.c.l.b16 %v575
    %v655 = vunpack.c.l.b16 %v576
    %v656 = vpack.c.b16 %v655, %v654
    %vm657 = vcmask 261120
    %v659 = vsel %vm657, %v651, 0
    %v662 = vsel %vm657, %v656, 0
    %664 = vmatpush.bf16.xpose.msra.mxu0 0
    %665 = vmatpush.bf16.xpose.msra.mxu0 0
    %666 = vmatpush.bf16.xpose.msra.mxu0 0
    %667 = vmatpush.bf16.xpose.msra.mxu0 0
    %668 = vmatpush.bf16.xpose.msra.mxu0 0
    %669 = vmatpush.bf16.xpose.msra.mxu0 0
    %670 = vmatpush.bf16.xpose.msra.mxu0 0
    %671 = vmatpush.bf16.xpose.msra.mxu0 %v662
    %672 = vmatmul.bf16.gmra.mxu0 %v659
    %v673 = vpop.f32.mrf.mxu0
    %v674 = vadd.f32 0.0, %v673
    %v675 = vpop.f32.mrf.mxu0
    %v676 = vadd.f32 0.0, %v675
    %677 = vdwg.mxu0
    %v680 = vunpack.c.l.b16 %v521
    %v681 = vunpack.c.l.b16 %v522
    %v682 = vpack.c.b16 %v681, %v680
    %v685 = vunpack.c.l.b16 %v577
    %v686 = vunpack.c.l.b16 %v578
    %v687 = vpack.c.b16 %v686, %v685
    %v689 = vsel %vm657, %v682, 0
    %v692 = vsel %vm657, %v687, 0
    %694 = vmatpush.bf16.xpose.msra.mxu0 0
    %695 = vmatpush.bf16.xpose.msra.mxu0 0
    %696 = vmatpush.bf16.xpose.msra.mxu0 0
    %697 = vmatpush.bf16.xpose.msra.mxu0 0
    %698 = vmatpush.bf16.xpose.msra.mxu0 0
    %699 = vmatpush.bf16.xpose.msra.mxu0 0
    %700 = vmatpush.bf16.xpose.msra.mxu0 0
    %701 = vmatpush.bf16.xpose.msra.mxu0 %v692
    %702 = vmatmul.bf16.gmra.mxu0 %v689
    %v703 = vpop.f32.mrf.mxu0
    %v704 = vadd.f32 0.0, %v703
    %v705 = vpop.f32.mrf.mxu0
    %v706 = vadd.f32 0.0, %v705
    %707 = vdwg.mxu0
    %v710 = vunpack.c.l.b16 %v523
    %v711 = vunpack.c.l.b16 %v524
    %v712 = vpack.c.b16 %v711, %v710
    %v715 = vunpack.c.l.b16 %v579
    %v716 = vunpack.c.l.b16 %v580
    %v717 = vpack.c.b16 %v716, %v715
    %v719 = vsel %vm657, %v712, 0
    %v722 = vsel %vm657, %v717, 0
    %724 = vmatpush.bf16.xpose.msra.mxu0 0
    %725 = vmatpush.bf16.xpose.msra.mxu0 0
    %726 = vmatpush.bf16.xpose.msra.mxu0 0
    %727 = vmatpush.bf16.xpose.msra.mxu0 0
    %728 = vmatpush.bf16.xpose.msra.mxu0 0
    %729 = vmatpush.bf16.xpose.msra.mxu0 0
    %730 = vmatpush.bf16.xpose.msra.mxu0 0
    %731 = vmatpush.bf16.xpose.msra.mxu0 %v722
    %732 = vmatmul.bf16.gmra.mxu0 %v719
    %v733 = vpop.f32.mrf.mxu0
    %v734 = vadd.f32 0.0, %v733
    %v735 = vpop.f32.mrf.mxu0
    %v736 = vadd.f32 0.0, %v735
    %737 = vdwg.mxu0
    %v740 = vunpack.c.l.b16 %v525
    %v741 = vunpack.c.l.b16 %v526
    %v742 = vpack.c.b16 %v741, %v740
    %v745 = vunpack.c.l.b16 %v581
    %v746 = vunpack.c.l.b16 %v582
    %v747 = vpack.c.b16 %v746, %v745
    %v749 = vsel %vm657, %v742, 0
    %v752 = vsel %vm657, %v747, 0
    %754 = vmatpush.bf16.xpose.msra.mxu0 0
    %755 = vmatpush.bf16.xpose.msra.mxu0 0
    %756 = vmatpush.bf16.xpose.msra.mxu0 0
    %757 = vmatpush.bf16.xpose.msra.mxu0 0
    %758 = vmatpush.bf16.xpose.msra.mxu0 0
    %759 = vmatpush.bf16.xpose.msra.mxu0 0
    %760 = vmatpush.bf16.xpose.msra.mxu0 0
    %761 = vmatpush.bf16.xpose.msra.mxu0 %v752
    %762 = vmatmul.bf16.gmra.mxu0 %v749
    %v763 = vpop.f32.mrf.mxu0
    %v764 = vadd.f32 0.0, %v763
    %v765 = vpop.f32.mrf.mxu0
    %v766 = vadd.f32 0.0, %v765
    %767 = vdwg.mxu0
    %v770 = vunpack.c.l.b16 %v527
    %v771 = vunpack.c.l.b16 %v528
    %v772 = vpack.c.b16 %v771, %v770
    %v775 = vunpack.c.l.b16 %v583
    %v776 = vunpack.c.l.b16 %v584
    %v777 = vpack.c.b16 %v776, %v775
    %v779 = vsel %vm657, %v772, 0
    %v782 = vsel %vm657, %v777, 0
    %784 = vmatpush.bf16.xpose.msra.mxu0 0
    %785 = vmatpush.bf16.xpose.msra.mxu0 0
    %786 = vmatpush.bf16.xpose.msra.mxu0 0
    %787 = vmatpush.bf16.xpose.msra.mxu0 0
    %788 = vmatpush.bf16.xpose.msra.mxu0 0
    %789 = vmatpush.bf16.xpose.msra.mxu0 0
    %790 = vmatpush.bf16.xpose.msra.mxu0 0
    %791 = vmatpush.bf16.xpose.msra.mxu0 %v782
    %792 = vmatmul.bf16.gmra.mxu0 %v779
    %v793 = vpop.f32.mrf.mxu0
    %v794 = vadd.f32 0.0, %v793
    %v795 = vpop.f32.mrf.mxu0
    %v796 = vadd.f32 0.0, %v795
    %797 = vdwg.mxu0
    %v800 = vunpack.c.l.b16 %v529
    %v801 = vunpack.c.l.b16 %v530
    %v802 = vpack.c.b16 %v801, %v800
    %v805 = vunpack.c.l.b16 %v585
    %v806 = vunpack.c.l.b16 %v586
    %v807 = vpack.c.b16 %v806, %v805
    %v809 = vsel %vm657, %v802, 0
    %v812 = vsel %vm657, %v807, 0
    %814 = vmatpush.bf16.xpose.msra.mxu0 0
    %815 = vmatpush.bf16.xpose.msra.mxu0 0
    %816 = vmatpush.bf16.xpose.msra.mxu0 0
    %817 = vmatpush.bf16.xpose.msra.mxu0 0
    %818 = vmatpush.bf16.xpose.msra.mxu0 0
    %819 = vmatpush.bf16.xpose.msra.mxu0 0
    %820 = vmatpush.bf16.xpose.msra.mxu0 0
    %821 = vmatpush.bf16.xpose.msra.mxu0 %v812
    %822 = vmatmul.bf16.gmra.mxu0 %v809
    %v823 = vpop.f32.mrf.mxu0
    %v824 = vadd.f32 0.0, %v823
    %v825 = vpop.f32.mrf.mxu0
    %v826 = vadd.f32 0.0, %v825
    %827 = vdwg.mxu0
    %v830 = vunpack.c.l.b16 %v531
    %v831 = vunpack.c.l.b16 %v532
    %v832 = vpack.c.b16 %v831, %v830
    %v835 = vunpack.c.l.b16 %v587
    %v836 = vunpack.c.l.b16 %v588
    %v837 = vpack.c.b16 %v836, %v835
    %v839 = vsel %vm657, %v832, 0
    %v842 = vsel %vm657, %v837, 0
    %844 = vmatpush.bf16.xpose.msra.mxu0 0
    %845 = vmatpush.bf16.xpose.msra.mxu0 0
    %846 = vmatpush.bf16.xpose.msra.mxu0 0
    %847 = vmatpush.bf16.xpose.msra.mxu0 0
    %848 = vmatpush.bf16.xpose.msra.mxu0 0
    %849 = vmatpush.bf16.xpose.msra.mxu0 0
    %850 = vmatpush.bf16.xpose.msra.mxu0 0
    %851 = vmatpush.bf16.xpose.msra.mxu0 %v842
    %852 = vmatmul.bf16.gmra.mxu0 %v839
    %v853 = vpop.f32.mrf.mxu0
    %v854 = vadd.f32 0.0, %v853
    %v855 = vpop.f32.mrf.mxu0
    %v856 = vadd.f32 0.0, %v855
    %857 = vdwg.mxu0
    %v860 = vunpack.c.l.b16 %v533
    %v861 = vunpack.c.l.b16 %v534
    %v862 = vpack.c.b16 %v861, %v860
    %v865 = vunpack.c.l.b16 %v589
    %v866 = vunpack.c.l.b16 %v590
    %v867 = vpack.c.b16 %v866, %v865
    %v869 = vsel %vm657, %v862, 0
    %v872 = vsel %vm657, %v867, 0
    %874 = vmatpush.bf16.xpose.msra.mxu0 0
    %875 = vmatpush.bf16.xpose.msra.mxu0 0
    %876 = vmatpush.bf16.xpose.msra.mxu0 0
    %877 = vmatpush.bf16.xpose.msra.mxu0 0
    %878 = vmatpush.bf16.xpose.msra.mxu0 0
    %879 = vmatpush.bf16.xpose.msra.mxu0 0
    %880 = vmatpush.bf16.xpose.msra.mxu0 0
    %881 = vmatpush.bf16.xpose.msra.mxu0 %v872
    %882 = vmatmul.bf16.gmra.mxu0 %v869
    %v883 = vpop.f32.mrf.mxu0
    %v884 = vadd.f32 0.0, %v883
    %v885 = vpop.f32.mrf.mxu0
    %v886 = vadd.f32 0.0, %v885
    %887 = vdwg.mxu0
    %vm888 = vcmask 130048
    %v889 = vsel %vm888, %v674, -inf
    %890 = vmax.xlane.f32.xlu0 %v889
    %v891 = vpop.xlane.xlu0 %890
    %v892 = vsel %vm888, %v676, -inf
    %893 = vmax.xlane.f32.xlu0 %v892
    %v894 = vpop.xlane.xlu0 %893
    %v895 = vsel %vm888, %v704, -inf
    %896 = vmax.xlane.f32.xlu0 %v895
    %v897 = vpop.xlane.xlu0 %896
    %v898 = vsel %vm888, %v706, -inf
    %899 = vmax.xlane.f32.xlu0 %v898
    %v900 = vpop.xlane.xlu0 %899
    %v901 = vsel %vm888, %v734, -inf
    %902 = vmax.xlane.f32.xlu0 %v901
    %v903 = vpop.xlane.xlu0 %902
    %v904 = vsel %vm888, %v736, -inf
    %905 = vmax.xlane.f32.xlu0 %v904
    %v906 = vpop.xlane.xlu0 %905
    %v907 = vsel %vm888, %v764, -inf
    %908 = vmax.xlane.f32.xlu0 %v907
    %v909 = vpop.xlane.xlu0 %908
    %v910 = vsel %vm888, %v766, -inf
    %911 = vmax.xlane.f32.xlu0 %v910
    %v912 = vpop.xlane.xlu0 %911
    %v913 = vsel %vm888, %v794, -inf
    %914 = vmax.xlane.f32.xlu0 %v913
    %v915 = vpop.xlane.xlu0 %914
    %v916 = vsel %vm888, %v796, -inf
    %917 = vmax.xlane.f32.xlu0 %v916
    %v918 = vpop.xlane.xlu0 %917
    %v919 = vsel %vm888, %v824, -inf
    %920 = vmax.xlane.f32.xlu0 %v919
    %v921 = vpop.xlane.xlu0 %920
    %v922 = vsel %vm888, %v826, -inf
    %923 = vmax.xlane.f32.xlu0 %v922
    %v924 = vpop.xlane.xlu0 %923
    %v925 = vsel %vm888, %v854, -inf
    %926 = vmax.xlane.f32.xlu0 %v925
    %v927 = vpop.xlane.xlu0 %926
    %v928 = vsel %vm888, %v856, -inf
    %929 = vmax.xlane.f32.xlu0 %v928
    %v930 = vpop.xlane.xlu0 %929
    %v931 = vsel %vm888, %v884, -inf
    %932 = vmax.xlane.f32.xlu0 %v931
    %v933 = vpop.xlane.xlu0 %932
    %v934 = vsel %vm888, %v886, -inf
    %935 = vmax.xlane.f32.xlu0 %v934
    %v936 = vpop.xlane.xlu0 %935
    %v937 = vsub.f32 %v674, %v891
    %v938 = vsub.f32 %v676, %v894
    %v939 = vsub.f32 %v704, %v897
    %v940 = vsub.f32 %v706, %v900
    %v941 = vsub.f32 %v734, %v903
    %v942 = vsub.f32 %v736, %v906
    %v943 = vsub.f32 %v764, %v909
    %v944 = vsub.f32 %v766, %v912
    %v945 = vsub.f32 %v794, %v915
    %v946 = vsub.f32 %v796, %v918
    %v947 = vsub.f32 %v824, %v921
    %v948 = vsub.f32 %v826, %v924
    %v949 = vsub.f32 %v854, %v927
    %v950 = vsub.f32 %v856, %v930
    %v951 = vsub.f32 %v884, %v933
    %v952 = vsub.f32 %v886, %v936
    %v953 = vmul.f32 %v937, 1.442695
    %v954 = vpow.pop %v953
    %v955 = vmul.f32 %v938, 1.442695
    %v956 = vpow.pop %v955
    %v957 = vmul.f32 %v939, 1.442695
    %v958 = vpow.pop %v957
    %v959 = vmul.f32 %v940, 1.442695
    %v960 = vpow.pop %v959
    %v961 = vmul.f32 %v941, 1.442695
    %v962 = vpow.pop %v961
    %v963 = vmul.f32 %v942, 1.442695
    %v964 = vpow.pop %v963
    %v965 = vmul.f32 %v943, 1.442695
    %v966 = vpow.pop %v965
    %v967 = vmul.f32 %v944, 1.442695
    %v968 = vpow.pop %v967
    %v969 = vmul.f32 %v945, 1.442695
    %v970 = vpow.pop %v969
    %v971 = vmul.f32 %v946, 1.442695
    %v972 = vpow.pop %v971
    %v973 = vmul.f32 %v947, 1.442695
    %v974 = vpow.pop %v973
    %v975 = vmul.f32 %v948, 1.442695
    %v976 = vpow.pop %v975
    %v977 = vmul.f32 %v949, 1.442695
    %v978 = vpow.pop %v977
    %v979 = vmul.f32 %v950, 1.442695
    %v980 = vpow.pop %v979
    %v981 = vmul.f32 %v951, 1.442695
    %v982 = vpow.pop %v981
    %v983 = vmul.f32 %v952, 1.442695
    %v984 = vpow.pop %v983
    %v985 = vsel %vm888, %v954, 0.0
    %986 = vadd.xlane.f32.xlu0 %v985
    %v987 = vpop.xlane.xlu0 %986
    %v988 = vsel %vm888, %v956, 0.0
    %989 = vadd.xlane.f32.xlu0 %v988
    %v990 = vpop.xlane.xlu0 %989
    %v991 = vsel %vm888, %v958, 0.0
    %992 = vadd.xlane.f32.xlu0 %v991
    %v993 = vpop.xlane.xlu0 %992
    %v994 = vsel %vm888, %v960, 0.0
    %995 = vadd.xlane.f32.xlu0 %v994
    %v996 = vpop.xlane.xlu0 %995
    %v997 = vsel %vm888, %v962, 0.0
    %998 = vadd.xlane.f32.xlu0 %v997
    %v999 = vpop.xlane.xlu0 %998
    %v1000 = vsel %vm888, %v964, 0.0
    %1001 = vadd.xlane.f32.xlu0 %v1000
    %v1002 = vpop.xlane.xlu0 %1001
    %v1003 = vsel %vm888, %v966, 0.0
    %1004 = vadd.xlane.f32.xlu0 %v1003
    %v1005 = vpop.xlane.xlu0 %1004
    %v1006 = vsel %vm888, %v968, 0.0
    %1007 = vadd.xlane.f32.xlu0 %v1006
    %v1008 = vpop.xlane.xlu0 %1007
    %v1009 = vsel %vm888, %v970, 0.0
    %1010 = vadd.xlane.f32.xlu0 %v1009
    %v1011 = vpop.xlane.xlu0 %1010
    %v1012 = vsel %vm888, %v972, 0.0
    %1013 = vadd.xlane.f32.xlu0 %v1012
    %v1014 = vpop.xlane.xlu0 %1013
    %v1015 = vsel %vm888, %v974, 0.0
    %1016 = vadd.xlane.f32.xlu0 %v1015
    %v1017 = vpop.xlane.xlu0 %1016
    %v1018 = vsel %vm888, %v976, 0.0
    %1019 = vadd.xlane.f32.xlu0 %v1018
    %v1020 = vpop.xlane.xlu0 %1019
    %v1021 = vsel %vm888, %v978, 0.0
    %1022 = vadd.xlane.f32.xlu0 %v1021
    %v1023 = vpop.xlane.xlu0 %1022
    %v1024 = vsel %vm888, %v980, 0.0
    %1025 = vadd.xlane.f32.xlu0 %v1024
    %v1026 = vpop.xlane.xlu0 %1025
    %v1027 = vsel %vm888, %v982, 0.0
    %1028 = vadd.xlane.f32.xlu0 %v1027
    %v1029 = vpop.xlane.xlu0 %1028
    %v1030 = vsel %vm888, %v984, 0.0
    %1031 = vadd.xlane.f32.xlu0 %v1030
    %v1032 = vpop.xlane.xlu0 %1031
    %v1033 = vrcp.pop %v987
    %v1034 = vrcp.pop %v990
    %v1035 = vrcp.pop %v993
    %v1036 = vrcp.pop %v996
    %v1037 = vrcp.pop %v999
    %v1038 = vrcp.pop %v1002
    %v1039 = vrcp.pop %v1005
    %v1040 = vrcp.pop %v1008
    %v1041 = vrcp.pop %v1011
    %v1042 = vrcp.pop %v1014
    %v1043 = vrcp.pop %v1017
    %v1044 = vrcp.pop %v1020
    %v1045 = vrcp.pop %v1023
    %v1046 = vrcp.pop %v1026
    %v1047 = vrcp.pop %v1029
    %v1048 = vrcp.pop %v1032
    %v1049 = vmul.f32 %v954, %v1033
    %v1050 = vmul.f32 %v956, %v1034
    %v1051 = vmul.f32 %v958, %v1035
    %v1052 = vmul.f32 %v960, %v1036
    %v1053 = vmul.f32 %v962, %v1037
    %v1054 = vmul.f32 %v964, %v1038
    %v1055 = vmul.f32 %v966, %v1039
    %v1056 = vmul.f32 %v968, %v1040
    %v1057 = vmul.f32 %v970, %v1041
    %v1058 = vmul.f32 %v972, %v1042
    %v1059 = vmul.f32 %v974, %v1043
    %v1060 = vmul.f32 %v976, %v1044
    %v1061 = vmul.f32 %v978, %v1045
    %v1062 = vmul.f32 %v980, %v1046
    %v1063 = vmul.f32 %v982, %v1047
    %v1064 = vmul.f32 %v984, %v1048
    %v1065 = vpack.c.bf16 %v1049, %v1049
    %v1066 = vpack.c.bf16 %v1050, %v1050
    %v1067 = vpack.c.bf16 %v1051, %v1051
    %v1068 = vpack.c.bf16 %v1052, %v1052
    %v1069 = vpack.c.bf16 %v1053, %v1053
    %v1070 = vpack.c.bf16 %v1054, %v1054
    %v1071 = vpack.c.bf16 %v1055, %v1055
    %v1072 = vpack.c.bf16 %v1056, %v1056
    %v1073 = vpack.c.bf16 %v1057, %v1057
    %v1074 = vpack.c.bf16 %v1058, %v1058
    %v1075 = vpack.c.bf16 %v1059, %v1059
    %v1076 = vpack.c.bf16 %v1060, %v1060
    %v1077 = vpack.c.bf16 %v1061, %v1061
    %v1078 = vpack.c.bf16 %v1062, %v1062
    %v1079 = vpack.c.bf16 %v1063, %v1063
    %v1080 = vpack.c.bf16 %v1064, %v1064
    %v1083 = vunpack.c.l.b16 %v1065
    %v1084 = vunpack.c.l.b16 %v1066
    %v1085 = vpack.c.b16 %v1084, %v1083
    %v1088 = vunpack.c.l.b16 %v631
    %v1089 = vunpack.c.l.b16 %v632
    %v1090 = vpack.c.b16 %v1089, %v1088
    %v1093 = vsel %vm888, %v1085, 0
    %1095 = vmatpush.bf16.msra.mxu0 0
    %1096 = vmatpush.bf16.msra.mxu0 0
    %1097 = vmatpush.bf16.msra.mxu0 0
    %1098 = vmatpush.bf16.msra.mxu0 0
    %1099 = vmatpush.bf16.msra.mxu0 0
    %1100 = vmatpush.bf16.msra.mxu0 0
    %1101 = vmatpush.bf16.msra.mxu0 0
    %1102 = vmatpush.bf16.msra.mxu0 %v1090
    %1103 = vmatmul.bf16.gmra.mxu0 %v1093
    %v1104 = vpop.f32.mrf.mxu0
    %v1105 = vadd.f32 0.0, %v1104
    %v1106 = vpop.f32.mrf.mxu0
    %v1107 = vadd.f32 0.0, %v1106
    %1108 = vdwg.mxu0
    %v1111 = vunpack.c.l.b16 %v1067
    %v1112 = vunpack.c.l.b16 %v1068
    %v1113 = vpack.c.b16 %v1112, %v1111
    %v1116 = vunpack.c.l.b16 %v633
    %v1117 = vunpack.c.l.b16 %v634
    %v1118 = vpack.c.b16 %v1117, %v1116
    %v1121 = vsel %vm888, %v1113, 0
    %1123 = vmatpush.bf16.msra.mxu0 0
    %1124 = vmatpush.bf16.msra.mxu0 0
    %1125 = vmatpush.bf16.msra.mxu0 0
    %1126 = vmatpush.bf16.msra.mxu0 0
    %1127 = vmatpush.bf16.msra.mxu0 0
    %1128 = vmatpush.bf16.msra.mxu0 0
    %1129 = vmatpush.bf16.msra.mxu0 0
    %1130 = vmatpush.bf16.msra.mxu0 %v1118
    %1131 = vmatmul.bf16.gmra.mxu0 %v1121
    %v1132 = vpop.f32.mrf.mxu0
    %v1133 = vadd.f32 0.0, %v1132
    %v1134 = vpop.f32.mrf.mxu0
    %v1135 = vadd.f32 0.0, %v1134
    %1136 = vdwg.mxu0
    %v1139 = vunpack.c.l.b16 %v1069
    %v1140 = vunpack.c.l.b16 %v1070
    %v1141 = vpack.c.b16 %v1140, %v1139
    %v1144 = vunpack.c.l.b16 %v635
    %v1145 = vunpack.c.l.b16 %v636
    %v1146 = vpack.c.b16 %v1145, %v1144
    %v1149 = vsel %vm888, %v1141, 0
    %1151 = vmatpush.bf16.msra.mxu0 0
    %1152 = vmatpush.bf16.msra.mxu0 0
    %1153 = vmatpush.bf16.msra.mxu0 0
    %1154 = vmatpush.bf16.msra.mxu0 0
    %1155 = vmatpush.bf16.msra.mxu0 0
    %1156 = vmatpush.bf16.msra.mxu0 0
    %1157 = vmatpush.bf16.msra.mxu0 0
    %1158 = vmatpush.bf16.msra.mxu0 %v1146
    %1159 = vmatmul.bf16.gmra.mxu0 %v1149
    %v1160 = vpop.f32.mrf.mxu0
    %v1161 = vadd.f32 0.0, %v1160
    %v1162 = vpop.f32.mrf.mxu0
    %v1163 = vadd.f32 0.0, %v1162
    %1164 = vdwg.mxu0
    %v1167 = vunpack.c.l.b16 %v1071
    %v1168 = vunpack.c.l.b16 %v1072
    %v1169 = vpack.c.b16 %v1168, %v1167
    %v1172 = vunpack.c.l.b16 %v637
    %v1173 = vunpack.c.l.b16 %v638
    %v1174 = vpack.c.b16 %v1173, %v1172
    %v1177 = vsel %vm888, %v1169, 0
    %1179 = vmatpush.bf16.msra.mxu0 0
    %1180 = vmatpush.bf16.msra.mxu0 0
    %1181 = vmatpush.bf16.msra.mxu0 0
    %1182 = vmatpush.bf16.msra.mxu0 0
    %1183 = vmatpush.bf16.msra.mxu0 0
    %1184 = vmatpush.bf16.msra.mxu0 0
    %1185 = vmatpush.bf16.msra.mxu0 0
    %1186 = vmatpush.bf16.msra.mxu0 %v1174
    %1187 = vmatmul.bf16.gmra.mxu0 %v1177
    %v1188 = vpop.f32.mrf.mxu0
    %v1189 = vadd.f32 0.0, %v1188
    %v1190 = vpop.f32.mrf.mxu0
    %v1191 = vadd.f32 0.0, %v1190
    %1192 = vdwg.mxu0
    %v1195 = vunpack.c.l.b16 %v1073
    %v1196 = vunpack.c.l.b16 %v1074
    %v1197 = vpack.c.b16 %v1196, %v1195
    %v1200 = vunpack.c.l.b16 %v639
    %v1201 = vunpack.c.l.b16 %v640
    %v1202 = vpack.c.b16 %v1201, %v1200
    %v1205 = vsel %vm888, %v1197, 0
    %1207 = vmatpush.bf16.msra.mxu0 0
    %1208 = vmatpush.bf16.msra.mxu0 0
    %1209 = vmatpush.bf16.msra.mxu0 0
    %1210 = vmatpush.bf16.msra.mxu0 0
    %1211 = vmatpush.bf16.msra.mxu0 0
    %1212 = vmatpush.bf16.msra.mxu0 0
    %1213 = vmatpush.bf16.msra.mxu0 0
    %1214 = vmatpush.bf16.msra.mxu0 %v1202
    %1215 = vmatmul.bf16.gmra.mxu0 %v1205
    %v1216 = vpop.f32.mrf.mxu0
    %v1217 = vadd.f32 0.0, %v1216
    %v1218 = vpop.f32.mrf.mxu0
    %v1219 = vadd.f32 0.0, %v1218
    %1220 = vdwg.mxu0
    %v1223 = vunpack.c.l.b16 %v1075
    %v1224 = vunpack.c.l.b16 %v1076
    %v1225 = vpack.c.b16 %v1224, %v1223
    %v1228 = vunpack.c.l.b16 %v641
    %v1229 = vunpack.c.l.b16 %v642
    %v1230 = vpack.c.b16 %v1229, %v1228
    %v1233 = vsel %vm888, %v1225, 0
    %1235 = vmatpush.bf16.msra.mxu0 0
    %1236 = vmatpush.bf16.msra.mxu0 0
    %1237 = vmatpush.bf16.msra.mxu0 0
    %1238 = vmatpush.bf16.msra.mxu0 0
    %1239 = vmatpush.bf16.msra.mxu0 0
    %1240 = vmatpush.bf16.msra.mxu0 0
    %1241 = vmatpush.bf16.msra.mxu0 0
    %1242 = vmatpush.bf16.msra.mxu0 %v1230
    %1243 = vmatmul.bf16.gmra.mxu0 %v1233
    %v1244 = vpop.f32.mrf.mxu0
    %v1245 = vadd.f32 0.0, %v1244
    %v1246 = vpop.f32.mrf.mxu0
    %v1247 = vadd.f32 0.0, %v1246
    %1248 = vdwg.mxu0
    %v1251 = vunpack.c.l.b16 %v1077
    %v1252 = vunpack.c.l.b16 %v1078
    %v1253 = vpack.c.b16 %v1252, %v1251
    %v1256 = vunpack.c.l.b16 %v643
    %v1257 = vunpack.c.l.b16 %v644
    %v1258 = vpack.c.b16 %v1257, %v1256
    %v1261 = vsel %vm888, %v1253, 0
    %1263 = vmatpush.bf16.msra.mxu0 0
    %1264 = vmatpush.bf16.msra.mxu0 0
    %1265 = vmatpush.bf16.msra.mxu0 0
    %1266 = vmatpush.bf16.msra.mxu0 0
    %1267 = vmatpush.bf16.msra.mxu0 0
    %1268 = vmatpush.bf16.msra.mxu0 0
    %1269 = vmatpush.bf16.msra.mxu0 0
    %1270 = vmatpush.bf16.msra.mxu0 %v1258
    %1271 = vmatmul.bf16.gmra.mxu0 %v1261
    %v1272 = vpop.f32.mrf.mxu0
    %v1273 = vadd.f32 0.0, %v1272
    %v1274 = vpop.f32.mrf.mxu0
    %v1275 = vadd.f32 0.0, %v1274
    %1276 = vdwg.mxu0
    %v1279 = vunpack.c.l.b16 %v1079
    %v1280 = vunpack.c.l.b16 %v1080
    %v1281 = vpack.c.b16 %v1280, %v1279
    %v1284 = vunpack.c.l.b16 %v645
    %v1285 = vunpack.c.l.b16 %v646
    %v1286 = vpack.c.b16 %v1285, %v1284
    %v1289 = vsel %vm888, %v1281, 0
    %1291 = vmatpush.bf16.msra.mxu0 0
    %1292 = vmatpush.bf16.msra.mxu0 0
    %1293 = vmatpush.bf16.msra.mxu0 0
    %1294 = vmatpush.bf16.msra.mxu0 0
    %1295 = vmatpush.bf16.msra.mxu0 0
    %1296 = vmatpush.bf16.msra.mxu0 0
    %1297 = vmatpush.bf16.msra.mxu0 0
    %1298 = vmatpush.bf16.msra.mxu0 %v1286
    %1299 = vmatmul.bf16.gmra.mxu0 %v1289
    %v1300 = vpop.f32.mrf.mxu0
    %v1301 = vadd.f32 0.0, %v1300
    %v1302 = vpop.f32.mrf.mxu0
    %v1303 = vadd.f32 0.0, %v1302
    %1304 = vdwg.mxu0
    %1309 = vrot.lane.b32.xlu0 %v1161, 32
    %v1310 = vpop.permute.xlu0 %1309
    %1311 = vrot.lane.b32.xlu0 %v1163, 32
    %v1312 = vpop.permute.xlu0 %1311
    %1313 = vrot.lane.b32.xlu0 %v1189, 32
    %v1314 = vpop.permute.xlu0 %1313
    %1315 = vrot.lane.b32.xlu0 %v1191, 32
    %v1316 = vpop.permute.xlu0 %1315
    %1325 = vrot.lane.b32.xlu0 %v1217, 64
    %v1326 = vpop.permute.xlu0 %1325
    %1327 = vrot.lane.b32.xlu0 %v1219, 64
    %v1328 = vpop.permute.xlu0 %1327
    %1329 = vrot.lane.b32.xlu0 %v1245, 64
    %v1330 = vpop.permute.xlu0 %1329
    %1331 = vrot.lane.b32.xlu0 %v1247, 64
    %v1332 = vpop.permute.xlu0 %1331
    %1341 = vrot.lane.b32.xlu0 %v1273, 96
    %v1342 = vpop.permute.xlu0 %1341
    %1343 = vrot.lane.b32.xlu0 %v1275, 96
    %v1344 = vpop.permute.xlu0 %1343
    %1345 = vrot.lane.b32.xlu0 %v1301, 96
    %v1346 = vpop.permute.xlu0 %1345
    %1347 = vrot.lane.b32.xlu0 %v1303, 96
    %v1348 = vpop.permute.xlu0 %1347
    %v1353 = vsel %vm657, %v1105, %v1310
    %v1354 = vsel %vm657, %v1107, %v1312
    %v1355 = vsel %vm657, %v1133, %v1314
    %v1356 = vsel %vm657, %v1135, %v1316
    %vm1357 = vcmask 523264
    %v1358 = vsel %vm1357, %v1353, %v1326
    %v1359 = vsel %vm1357, %v1354, %v1328
    %v1360 = vsel %vm1357, %v1355, %v1330
    %v1361 = vsel %vm1357, %v1356, %v1332
    %vm1362 = vcmask 785408
    %v1363 = vsel %vm1362, %v1358, %v1342
    %v1364 = vsel %vm1362, %v1359, %v1344
    %v1365 = vsel %vm1362, %v1360, %v1346
    %v1366 = vsel %vm1362, %v1361, %v1348
    %v1367 = vpack.c.bf16 %v1364, %v1363
    %v1368 = vpack.c.bf16 %v1366, %v1365
    %v1369 = vld [vmem:[#allocation8] sm:$0xf]
    %v1370 = vld [vmem:[#allocation8 + $0x4] sm:$0xf]
    %v1371 = vld [vmem:[#allocation8 + $0x8] sm:$0xf]
    %v1372 = vld [vmem:[#allocation8 + $0xc] sm:$0xf]
    %v1373 = vld [vmem:[#allocation8 + $0x10] sm:$0xf]
    %v1374 = vld [vmem:[#allocation8 + $0x14] sm:$0xf]
    %v1375 = vld [vmem:[#allocation8 + $0x18] sm:$0xf]
    %v1376 = vld [vmem:[#allocation8 + $0x1c] sm:$0xf]
    %v1377 = vld [vmem:[#allocation8 + $0x20] sm:$0xf]
    %v1378 = vld [vmem:[#allocation8 + $0x24] sm:$0xf]
    %v1379 = vld [vmem:[#allocation8 + $0x28] sm:$0xf]
    %v1380 = vld [vmem:[#allocation8 + $0x2c] sm:$0xf]
    %v1381 = vld [vmem:[#allocation8 + $0x30] sm:$0xf]
    %v1382 = vld [vmem:[#allocation8 + $0x34] sm:$0xf]
    %v1383 = vld [vmem:[#allocation8 + $0x38] sm:$0xf]
    %v1384 = vld [vmem:[#allocation8 + $0x3c] sm:$0xf]
    %v1386 = vperm.slane %v156, 0
    %v1404 = vunpack.c.l.b16 %v1369
    %v1405 = vunpack.c.l.b16 %v1370
    %v1406 = vunpack.c.l.b16 %v1371
    %v1407 = vunpack.c.l.b16 %v1372
    %v1408 = vunpack.c.l.b16 %v1373
    %v1409 = vunpack.c.l.b16 %v1374
    %v1410 = vunpack.c.l.b16 %v1375
    %v1411 = vunpack.c.l.b16 %v1376
    %v1412 = vunpack.c.l.b16 %v1377
    %v1413 = vunpack.c.l.b16 %v1378
    %v1414 = vunpack.c.l.b16 %v1379
    %v1415 = vunpack.c.l.b16 %v1380
    %v1416 = vunpack.c.l.b16 %v1381
    %v1417 = vunpack.c.l.b16 %v1382
    %v1418 = vunpack.c.l.b16 %v1383
    %v1419 = vunpack.c.l.b16 %v1384
    %v1420 = vpack.c.b16 %v1405, %v1404
    %v1421 = vpack.c.b16 %v1407, %v1406
    %v1422 = vpack.c.b16 %v1409, %v1408
    %v1423 = vpack.c.b16 %v1411, %v1410
    %v1424 = vpack.c.b16 %v1413, %v1412
    %v1425 = vpack.c.b16 %v1415, %v1414
    %v1426 = vpack.c.b16 %v1417, %v1416
    %v1427 = vpack.c.b16 %v1419, %v1418
    %1436 = vmatpush.bf16.msra.mxu0 %v1427
    %1437 = vmatpush.bf16.msra.mxu0 %v1426
    %1438 = vmatpush.bf16.msra.mxu0 %v1425
    %1439 = vmatpush.bf16.msra.mxu0 %v1424
    %1440 = vmatpush.bf16.msra.mxu0 %v1423
    %1441 = vmatpush.bf16.msra.mxu0 %v1422
    %1442 = vmatpush.bf16.msra.mxu0 %v1421
    %1443 = vmatpush.bf16.msra.mxu0 %v1420
    %1444 = vmatmul.bf16.gmra.mxu0 %v1367
    %v1445 = vpop.f32.mrf.mxu0
    %v1446 = vadd.f32 %v1386, %v1445
    %v1447 = vpop.f32.mrf.mxu0
    %v1448 = vadd.f32 %v1386, %v1447
    %1449 = vmatmul.bf16.gmra.mxu0 %v1368
    %v1450 = vpop.f32.mrf.mxu0
    %v1451 = vadd.f32 %v1386, %v1450
    %v1452 = vpop.f32.mrf.mxu0
    %v1453 = vadd.f32 %v1386, %v1452
    %1454 = vdwg.mxu0
    %v1455 = vadd.f32 %v148, %v1446
    %v1456 = vadd.f32 %v149, %v1448
    %v1457 = vadd.f32 %v150, %v1451
    %v1458 = vadd.f32 %v151, %v1453
    %1459 = vadd.xlane.f32.xlu0 %v1455
    %v1460 = vpop.xlane.xlu0 %1459
    %1461 = vadd.xlane.f32.xlu0 %v1456
    %v1462 = vpop.xlane.xlu0 %1461
    %1463 = vadd.xlane.f32.xlu0 %v1457
    %v1464 = vpop.xlane.xlu0 %1463
    %1465 = vadd.xlane.f32.xlu0 %v1458
    %v1466 = vpop.xlane.xlu0 %1465
    %v1467 = vmul.f32 %v1460, %v173
    %v1468 = vmul.f32 %v1462, %v173
    %v1469 = vmul.f32 %v1464, %v173
    %v1470 = vmul.f32 %v1466, %v173
    %v1471 = vsub.f32 %v1455, %v1467
    %v1472 = vsub.f32 %v1456, %v1468
    %v1473 = vsub.f32 %v1457, %v1469
    %v1474 = vsub.f32 %v1458, %v1470
    %v1475 = vmul.f32 %v1471, %v1471
    %v1476 = vmul.f32 %v1472, %v1472
    %v1477 = vmul.f32 %v1473, %v1473
    %v1478 = vmul.f32 %v1474, %v1474
    %1479 = vadd.xlane.f32.xlu0 %v1475
    %v1480 = vpop.xlane.xlu0 %1479
    %1481 = vadd.xlane.f32.xlu0 %v1476
    %v1482 = vpop.xlane.xlu0 %1481
    %1483 = vadd.xlane.f32.xlu0 %v1477
    %v1484 = vpop.xlane.xlu0 %1483
    %1485 = vadd.xlane.f32.xlu0 %v1478
    %v1486 = vpop.xlane.xlu0 %1485
    %v1487 = vmul.f32 %v1480, %v173
    %v1488 = vmul.f32 %v1482, %v173
    %v1489 = vmul.f32 %v1484, %v173
    %v1490 = vmul.f32 %v1486, %v173
    %v1491 = vadd.f32 %v1487, 1e-05
    %v1492 = vadd.f32 %v1488, 1e-05
    %v1493 = vadd.f32 %v1489, 1e-05
    %v1494 = vadd.f32 %v1490, 1e-05
    %v1495 = vrsqrt.pop %v1491
    %v1496 = vmul.f32 %v1495, %v1491
    %v1497 = vmul.f32 %v1496, %v1495
    %v1498 = vmul.f32 0.5, %v1497
    %v1499 = vsub.f32 1.5, %v1498
    %v1500 = vmul.f32 %v1495, %v1499
    %vm1501 = vweird.f32 %v1491
    %vm1502 = vweird.f32 %v1495
    %vm1503 = vmor %vm1501, %vm1502
    %v1504 = vsel %vm1503, %v1495, %v1500
    %v1505 = vrsqrt.pop %v1492
    %v1506 = vmul.f32 %v1505, %v1492
    %v1507 = vmul.f32 %v1506, %v1505
    %v1508 = vmul.f32 0.5, %v1507
    %v1509 = vsub.f32 1.5, %v1508
    %v1510 = vmul.f32 %v1505, %v1509
    %vm1511 = vweird.f32 %v1492
    %vm1512 = vweird.f32 %v1505
    %vm1513 = vmor %vm1511, %vm1512
    %v1514 = vsel %vm1513, %v1505, %v1510
    %v1515 = vrsqrt.pop %v1493
    %v1516 = vmul.f32 %v1515, %v1493
    %v1517 = vmul.f32 %v1516, %v1515
    %v1518 = vmul.f32 0.5, %v1517
    %v1519 = vsub.f32 1.5, %v1518
    %v1520 = vmul.f32 %v1515, %v1519
    %vm1521 = vweird.f32 %v1493
    %vm1522 = vweird.f32 %v1515
    %vm1523 = vmor %vm1521, %vm1522
    %v1524 = vsel %vm1523, %v1515, %v1520
    %v1525 = vrsqrt.pop %v1494
    %v1526 = vmul.f32 %v1525, %v1494
    %v1527 = vmul.f32 %v1526, %v1525
    %v1528 = vmul.f32 0.5, %v1527
    %v1529 = vsub.f32 1.5, %v1528
    %v1530 = vmul.f32 %v1525, %v1529
    %vm1531 = vweird.f32 %v1494
    %vm1532 = vweird.f32 %v1525
    %vm1533 = vmor %vm1531, %vm1532
    %v1534 = vsel %vm1533, %v1525, %v1530
    %v1535 = vmul.f32 %v1471, %v1504
    %v1536 = vmul.f32 %v1472, %v1514
    %v1537 = vmul.f32 %v1473, %v1524
    %v1538 = vmul.f32 %v1474, %v1534
    %v1540 = vperm.slane %v154, 0
    %v1542 = vmul.f32 %v1535, %v1540
    %v1543 = vmul.f32 %v1536, %v1540
    %v1544 = vmul.f32 %v1537, %v1540
    %v1545 = vmul.f32 %v1538, %v1540
    %v1547 = vperm.slane %v155, 0
    %v1549 = vadd.f32 %v1542, %v1547
    %v1550 = vadd.f32 %v1543, %v1547
    %v1551 = vadd.f32 %v1544, %v1547
    %v1552 = vadd.f32 %v1545, %v1547
    %v1553 = vpack.c.bf16 %v1550, %v1549
    %v1554 = vpack.c.bf16 %v1552, %v1551
    %v1555 = vld [vmem:[#allocation11] sm:$0xff]
    %v1556 = vld [vmem:[#allocation11 + $0x8] sm:$0xff]
    %v1557 = vld [vmem:[#allocation11 + $0x10] sm:$0xff]
    %v1558 = vld [vmem:[#allocation11 + $0x18] sm:$0xff]
    %v1559 = vld [vmem:[#allocation11 + $0x20] sm:$0xff]
    %v1560 = vld [vmem:[#allocation11 + $0x28] sm:$0xff]
    %v1561 = vld [vmem:[#allocation11 + $0x30] sm:$0xff]
    %v1562 = vld [vmem:[#allocation11 + $0x38] sm:$0xff]
    %v1563 = vld [vmem:[#allocation11 + $0x40] sm:$0xff]
    %v1564 = vld [vmem:[#allocation11 + $0x48] sm:$0xff]
    %v1565 = vld [vmem:[#allocation11 + $0x50] sm:$0xff]
    %v1566 = vld [vmem:[#allocation11 + $0x58] sm:$0xff]
    %v1567 = vld [vmem:[#allocation11 + $0x60] sm:$0xff]
    %v1568 = vld [vmem:[#allocation11 + $0x68] sm:$0xff]
    %v1569 = vld [vmem:[#allocation11 + $0x70] sm:$0xff]
    %v1570 = vld [vmem:[#allocation11 + $0x78] sm:$0xff]
    %v1571 = vld [vmem:[#allocation11 + $0x80] sm:$0xff]
    %v1572 = vld [vmem:[#allocation11 + $0x88] sm:$0xff]
    %v1573 = vld [vmem:[#allocation11 + $0x90] sm:$0xff]
    %v1574 = vld [vmem:[#allocation11 + $0x98] sm:$0xff]
    %v1575 = vld [vmem:[#allocation11 + $0xa0] sm:$0xff]
    %v1576 = vld [vmem:[#allocation11 + $0xa8] sm:$0xff]
    %v1577 = vld [vmem:[#allocation11 + $0xb0] sm:$0xff]
    %v1578 = vld [vmem:[#allocation11 + $0xb8] sm:$0xff]
    %v1579 = vld [vmem:[#allocation11 + $0xc0] sm:$0xff]
    %v1580 = vld [vmem:[#allocation11 + $0xc8] sm:$0xff]
    %v1581 = vld [vmem:[#allocation11 + $0xd0] sm:$0xff]
    %v1582 = vld [vmem:[#allocation11 + $0xd8] sm:$0xff]
    %v1583 = vld [vmem:[#allocation11 + $0xe0] sm:$0xff]
    %v1584 = vld [vmem:[#allocation11 + $0xe8] sm:$0xff]
    %v1585 = vld [vmem:[#allocation11 + $0xf0] sm:$0xff]
    %v1586 = vld [vmem:[#allocation11 + $0xf8] sm:$0xff]
    %v1588 = vperm.slane %v157, 0
    %v1589 = vperm.slane %v157, 1
    %v1590 = vperm.slane %v157, 2
    %v1591 = vperm.slane %v157, 3
    %v1628 = vunpack.c.l.b16 %v1555
    %v1629 = vunpack.c.h.b16 %v1555
    %v1630 = vunpack.c.l.b16 %v1556
    %v1631 = vunpack.c.h.b16 %v1556
    %v1632 = vunpack.c.l.b16 %v1557
    %v1633 = vunpack.c.h.b16 %v1557
    %v1634 = vunpack.c.l.b16 %v1558
    %v1635 = vunpack.c.h.b16 %v1558
    %v1636 = vunpack.c.l.b16 %v1559
    %v1637 = vunpack.c.h.b16 %v1559
    %v1638 = vunpack.c.l.b16 %v1560
    %v1639 = vunpack.c.h.b16 %v1560
    %v1640 = vunpack.c.l.b16 %v1561
    %v1641 = vunpack.c.h.b16 %v1561
    %v1642 = vunpack.c.l.b16 %v1562
    %v1643 = vunpack.c.h.b16 %v1562
    %v1644 = vunpack.c.l.b16 %v1563
    %v1645 = vunpack.c.h.b16 %v1563
    %v1646 = vunpack.c.l.b16 %v1564
    %v1647 = vunpack.c.h.b16 %v1564
    %v1648 = vunpack.c.l.b16 %v1565
    %v1649 = vunpack.c.h.b16 %v1565
    %v1650 = vunpack.c.l.b16 %v1566
    %v1651 = vunpack.c.h.b16 %v1566
    %v1652 = vunpack.c.l.b16 %v1567
    %v1653 = vunpack.c.h.b16 %v1567
    %v1654 = vunpack.c.l.b16 %v1568
    %v1655 = vunpack.c.h.b16 %v1568
    %v1656 = vunpack.c.l.b16 %v1569
    %v1657 = vunpack.c.h.b16 %v1569
    %v1658 = vunpack.c.l.b16 %v1570
    %v1659 = vunpack.c.h.b16 %v1570
    %v1660 = vunpack.c.l.b16 %v1571
    %v1661 = vunpack.c.h.b16 %v1571
    %v1662 = vunpack.c.l.b16 %v1572
    %v1663 = vunpack.c.h.b16 %v1572
    %v1664 = vunpack.c.l.b16 %v1573
    %v1665 = vunpack.c.h.b16 %v1573
    %v1666 = vunpack.c.l.b16 %v1574
    %v1667 = vunpack.c.h.b16 %v1574
    %v1668 = vunpack.c.l.b16 %v1575
    %v1669 = vunpack.c.h.b16 %v1575
    %v1670 = vunpack.c.l.b16 %v1576
    %v1671 = vunpack.c.h.b16 %v1576
    %v1672 = vunpack.c.l.b16 %v1577
    %v1673 = vunpack.c.h.b16 %v1577
    %v1674 = vunpack.c.l.b16 %v1578
    %v1675 = vunpack.c.h.b16 %v1578
    %v1676 = vunpack.c.l.b16 %v1579
    %v1677 = vunpack.c.h.b16 %v1579
    %v1678 = vunpack.c.l.b16 %v1580
    %v1679 = vunpack.c.h.b16 %v1580
    %v1680 = vunpack.c.l.b16 %v1581
    %v1681 = vunpack.c.h.b16 %v1581
    %v1682 = vunpack.c.l.b16 %v1582
    %v1683 = vunpack.c.h.b16 %v1582
    %v1684 = vunpack.c.l.b16 %v1583
    %v1685 = vunpack.c.h.b16 %v1583
    %v1686 = vunpack.c.l.b16 %v1584
    %v1687 = vunpack.c.h.b16 %v1584
    %v1688 = vunpack.c.l.b16 %v1585
    %v1689 = vunpack.c.h.b16 %v1585
    %v1690 = vunpack.c.l.b16 %v1586
    %v1691 = vunpack.c.h.b16 %v1586
    %v1692 = vpack.c.b16 %v1632, %v1628
    %v1693 = vpack.c.b16 %v1633, %v1629
    %v1694 = vpack.c.b16 %v1634, %v1630
    %v1695 = vpack.c.b16 %v1635, %v1631
    %v1696 = vpack.c.b16 %v1640, %v1636
    %v1697 = vpack.c.b16 %v1641, %v1637
    %v1698 = vpack.c.b16 %v1642, %v1638
    %v1699 = vpack.c.b16 %v1643, %v1639
    %v1700 = vpack.c.b16 %v1648, %v1644
    %v1701 = vpack.c.b16 %v1649, %v1645
    %v1702 = vpack.c.b16 %v1650, %v1646
    %v1703 = vpack.c.b16 %v1651, %v1647
    %v1704 = vpack.c.b16 %v1656, %v1652
    %v1705 = vpack.c.b16 %v1657, %v1653
    %v1706 = vpack.c.b16 %v1658, %v1654
    %v1707 = vpack.c.b16 %v1659, %v1655
    %v1708 = vpack.c.b16 %v1664, %v1660
    %v1709 = vpack.c.b16 %v1665, %v1661
    %v1710 = vpack.c.b16 %v1666, %v1662
    %v1711 = vpack.c.b16 %v1667, %v1663
    %v1712 = vpack.c.b16 %v1672, %v1668
    %v1713 = vpack.c.b16 %v1673, %v1669
    %v1714 = vpack.c.b16 %v1674, %v1670
    %v1715 = vpack.c.b16 %v1675, %v1671
    %v1716 = vpack.c.b16 %v1680, %v1676
    %v1717 = vpack.c.b16 %v1681, %v1677
    %v1718 = vpack.c.b16 %v1682, %v1678
    %v1719 = vpack.c.b16 %v1683, %v1679
    %v1720 = vpack.c.b16 %v1688, %v1684
    %v1721 = vpack.c.b16 %v1689, %v1685
    %v1722 = vpack.c.b16 %v1690, %v1686
    %v1723 = vpack.c.b16 %v1691, %v1687
    %1756 = vmatpush.bf16.msra.mxu0 %v1720
    %1757 = vmatpush.bf16.msra.mxu0 %v1716
    %1758 = vmatpush.bf16.msra.mxu0 %v1712
    %1759 = vmatpush.bf16.msra.mxu0 %v1708
    %1760 = vmatpush.bf16.msra.mxu0 %v1704
    %1761 = vmatpush.bf16.msra.mxu0 %v1700
    %1762 = vmatpush.bf16.msra.mxu0 %v1696
    %1763 = vmatpush.bf16.msra.mxu0 %v1692
    %1764 = vmatmul.bf16.gmra.mxu0 %v1553
    %v1765 = vpop.f32.mrf.mxu0
    %v1766 = vadd.f32 %v1588, %v1765
    %v1767 = vpop.f32.mrf.mxu0
    %v1768 = vadd.f32 %v1588, %v1767
    %1769 = vmatmul.bf16.gmra.mxu0 %v1554
    %v1770 = vpop.f32.mrf.mxu0
    %v1771 = vadd.f32 %v1588, %v1770
    %v1772 = vpop.f32.mrf.mxu0
    %v1773 = vadd.f32 %v1588, %v1772
    %1774 = vdwg.mxu0
    %1775 = vmatpush.bf16.msra.mxu0 %v1721
    %1776 = vmatpush.bf16.msra.mxu0 %v1717
    %1777 = vmatpush.bf16.msra.mxu0 %v1713
    %1778 = vmatpush.bf16.msra.mxu0 %v1709
    %1779 = vmatpush.bf16.msra.mxu0 %v1705
    %1780 = vmatpush.bf16.msra.mxu0 %v1701
    %1781 = vmatpush.bf16.msra.mxu0 %v1697
    %1782 = vmatpush.bf16.msra.mxu0 %v1693
    %1783 = vmatmul.bf16.gmra.mxu0 %v1553
    %v1784 = vpop.f32.mrf.mxu0
    %v1785 = vadd.f32 %v1589, %v1784
    %v1786 = vpop.f32.mrf.mxu0
    %v1787 = vadd.f32 %v1589, %v1786
    %1788 = vmatmul.bf16.gmra.mxu0 %v1554
    %v1789 = vpop.f32.mrf.mxu0
    %v1790 = vadd.f32 %v1589, %v1789
    %v1791 = vpop.f32.mrf.mxu0
    %v1792 = vadd.f32 %v1589, %v1791
    %1793 = vdwg.mxu0
    %1794 = vmatpush.bf16.msra.mxu0 %v1722
    %1795 = vmatpush.bf16.msra.mxu0 %v1718
    %1796 = vmatpush.bf16.msra.mxu0 %v1714
    %1797 = vmatpush.bf16.msra.mxu0 %v1710
    %1798 = vmatpush.bf16.msra.mxu0 %v1706
    %1799 = vmatpush.bf16.msra.mxu0 %v1702
    %1800 = vmatpush.bf16.msra.mxu0 %v1698
    %1801 = vmatpush.bf16.msra.mxu0 %v1694
    %1802 = vmatmul.bf16.gmra.mxu0 %v1553
    %v1803 = vpop.f32.mrf.mxu0
    %v1804 = vadd.f32 %v1590, %v1803
    %v1805 = vpop.f32.mrf.mxu0
    %v1806 = vadd.f32 %v1590, %v1805
    %1807 = vmatmul.bf16.gmra.mxu0 %v1554
    %v1808 = vpop.f32.mrf.mxu0
    %v1809 = vadd.f32 %v1590, %v1808
    %v1810 = vpop.f32.mrf.mxu0
    %v1811 = vadd.f32 %v1590, %v1810
    %1812 = vdwg.mxu0
    %1813 = vmatpush.bf16.msra.mxu0 %v1723
    %1814 = vmatpush.bf16.msra.mxu0 %v1719
    %1815 = vmatpush.bf16.msra.mxu0 %v1715
    %1816 = vmatpush.bf16.msra.mxu0 %v1711
    %1817 = vmatpush.bf16.msra.mxu0 %v1707
    %1818 = vmatpush.bf16.msra.mxu0 %v1703
    %1819 = vmatpush.bf16.msra.mxu0 %v1699
    %1820 = vmatpush.bf16.msra.mxu0 %v1695
    %1821 = vmatmul.bf16.gmra.mxu0 %v1553
    %v1822 = vpop.f32.mrf.mxu0
    %v1823 = vadd.f32 %v1591, %v1822
    %v1824 = vpop.f32.mrf.mxu0
    %v1825 = vadd.f32 %v1591, %v1824
    %1826 = vmatmul.bf16.gmra.mxu0 %v1554
    %v1827 = vpop.f32.mrf.mxu0
    %v1828 = vadd.f32 %v1591, %v1827
    %v1829 = vpop.f32.mrf.mxu0
    %v1830 = vadd.f32 %v1591, %v1829
    %1831 = vdwg.mxu0
    %v1832 = vmul.f32 %v1766, 0.5
    %v1833 = vmul.f32 %v1785, 0.5
    %v1834 = vmul.f32 %v1804, 0.5
    %v1835 = vmul.f32 %v1823, 0.5
    %v1836 = vmul.f32 %v1768, 0.5
    %v1837 = vmul.f32 %v1787, 0.5
    %v1838 = vmul.f32 %v1806, 0.5
    %v1839 = vmul.f32 %v1825, 0.5
    %v1840 = vmul.f32 %v1771, 0.5
    %v1841 = vmul.f32 %v1790, 0.5
    %v1842 = vmul.f32 %v1809, 0.5
    %v1843 = vmul.f32 %v1828, 0.5
    %v1844 = vmul.f32 %v1773, 0.5
    %v1845 = vmul.f32 %v1792, 0.5
    %v1846 = vmul.f32 %v1811, 0.5
    %v1847 = vmul.f32 %v1830, 0.5
    %v1848 = vmul.f32 %v1766, 0.70710677
    %v1849 = vmul.f32 %v1785, 0.70710677
    %v1850 = vmul.f32 %v1804, 0.70710677
    %v1851 = vmul.f32 %v1823, 0.70710677
    %v1852 = vmul.f32 %v1768, 0.70710677
    %v1853 = vmul.f32 %v1787, 0.70710677
    %v1854 = vmul.f32 %v1806, 0.70710677
    %v1855 = vmul.f32 %v1825, 0.70710677
    %v1856 = vmul.f32 %v1771, 0.70710677
    %v1857 = vmul.f32 %v1790, 0.70710677
    %v1858 = vmul.f32 %v1809, 0.70710677
    %v1859 = vmul.f32 %v1828, 0.70710677
    %v1860 = vmul.f32 %v1773, 0.70710677
    %v1861 = vmul.f32 %v1792, 0.70710677
    %v1862 = vmul.f32 %v1811, 0.70710677
    %v1863 = vmul.f32 %v1830, 0.70710677
    %v1864 = vmul.f32 %v1848, %v1848
    %v1865 = vmin.f32 16.0, %v1864
    %v1866 = vmul.f32 %v1865, 2.1237322e-06
    %v1867 = vadd.f32 %v1866, 0.00028619796
    %v1868 = vmul.f32 %v1865, %v1867
    %v1869 = vadd.f32 %v1868, 0.0036580483
    %v1870 = vmul.f32 %v1865, %v1869
    %v1871 = vadd.f32 %v1870, 0.05243302
    %v1872 = vmul.f32 %v1865, %v1871
    %v1873 = vadd.f32 %v1872, 0.18741608
    %v1874 = vmul.f32 %v1865, %v1873
    %v1875 = vadd.f32 %v1874, 1.1283791
    %v1876 = vmul.f32 %v1848, %v1875
    %v1877 = vmul.f32 %v1865, 3.8918573e-05
    %v1878 = vadd.f32 %v1877, 0.001143296
    %v1879 = vmul.f32 %v1865, %v1878
    %v1880 = vadd.f32 %v1879, 0.014752088
    %v1881 = vmul.f32 %v1865, %v1880
    %v1882 = vadd.f32 %v1881, 0.112945676
    %v1883 = vmul.f32 %v1865, %v1882
    %v1884 = vadd.f32 %v1883, 0.4994258
    %v1885 = vmul.f32 %v1865, %v1884
    %v1886 = vadd.f32 %v1885, 1.0
    %v1887 = vrcp.pop %v1886
    %v1888 = vmul.f32 %v1886, %v1887
    %v1889 = vsub.f32 1.0, %v1888
    %v1890 = vmul.f32 %v1887, %v1889
    %v1891 = vadd.f32 %v1887, %v1890
    %vm1892 = vweird.f32 %v1886
    %vm1893 = vweird.f32 %v1887
    %vm1894 = vmor %vm1892, %vm1893
    %v1895 = vsel %vm1894, %v1887, %v1891
    %v1896 = vand.u32 2147483647, %v1886
    %vm1897 = vcmp.eq.f32.partialorder %v1896, 8.507059e+37
    %v1898 = vand.u32 %v1886, 2147483648
    %v1899 = vor.u32 1.1754944e-38, %v1898
    %v1900 = vsel %vm1897, %v1899, %v1895
    %v1901 = vmul.f32 %v1876, %v1900
    %v1902 = vmin.f32 %v1901, 1.0
    %v1903 = vmax.f32 %v1902, -1.0
    %v1904 = vmul.f32 %v1849, %v1849
    %v1905 = vmin.f32 16.0, %v1904
    %v1906 = vmul.f32 %v1905, 2.1237322e-06
    %v1907 = vadd.f32 %v1906, 0.00028619796
    %v1908 = vmul.f32 %v1905, %v1907
    %v1909 = vadd.f32 %v1908, 0.0036580483
    %v1910 = vmul.f32 %v1905, %v1909
    %v1911 = vadd.f32 %v1910, 0.05243302
    %v1912 = vmul.f32 %v1905, %v1911
    %v1913 = vadd.f32 %v1912, 0.18741608
    %v1914 = vmul.f32 %v1905, %v1913
    %v1915 = vadd.f32 %v1914, 1.1283791
    %v1916 = vmul.f32 %v1849, %v1915
    %v1917 = vmul.f32 %v1905, 3.8918573e-05
    %v1918 = vadd.f32 %v1917, 0.001143296
    %v1919 = vmul.f32 %v1905, %v1918
    %v1920 = vadd.f32 %v1919, 0.014752088
    %v1921 = vmul.f32 %v1905, %v1920
    %v1922 = vadd.f32 %v1921, 0.112945676
    %v1923 = vmul.f32 %v1905, %v1922
    %v1924 = vadd.f32 %v1923, 0.4994258
    %v1925 = vmul.f32 %v1905, %v1924
    %v1926 = vadd.f32 %v1925, 1.0
    %v1927 = vrcp.pop %v1926
    %v1928 = vmul.f32 %v1926, %v1927
    %v1929 = vsub.f32 1.0, %v1928
    %v1930 = vmul.f32 %v1927, %v1929
    %v1931 = vadd.f32 %v1927, %v1930
    %vm1932 = vweird.f32 %v1926
    %vm1933 = vweird.f32 %v1927
    %vm1934 = vmor %vm1932, %vm1933
    %v1935 = vsel %vm1934, %v1927, %v1931
    %v1936 = vand.u32 2147483647, %v1926
    %vm1937 = vcmp.eq.f32.partialorder %v1936, 8.507059e+37
    %v1938 = vand.u32 %v1926, 2147483648
    %v1939 = vor.u32 1.1754944e-38, %v1938
    %v1940 = vsel %vm1937, %v1939, %v1935
    %v1941 = vmul.f32 %v1916, %v1940
    %v1942 = vmin.f32 %v1941, 1.0
    %v1943 = vmax.f32 %v1942, -1.0
    %v1944 = vmul.f32 %v1850, %v1850
    %v1945 = vmin.f32 16.0, %v1944
    %v1946 = vmul.f32 %v1945, 2.1237322e-06
    %v1947 = vadd.f32 %v1946, 0.00028619796
    %v1948 = vmul.f32 %v1945, %v1947
    %v1949 = vadd.f32 %v1948, 0.0036580483
    %v1950 = vmul.f32 %v1945, %v1949
    %v1951 = vadd.f32 %v1950, 0.05243302
    %v1952 = vmul.f32 %v1945, %v1951
    %v1953 = vadd.f32 %v1952, 0.18741608
    %v1954 = vmul.f32 %v1945, %v1953
    %v1955 = vadd.f32 %v1954, 1.1283791
    %v1956 = vmul.f32 %v1850, %v1955
    %v1957 = vmul.f32 %v1945, 3.8918573e-05
    %v1958 = vadd.f32 %v1957, 0.001143296
    %v1959 = vmul.f32 %v1945, %v1958
    %v1960 = vadd.f32 %v1959, 0.014752088
    %v1961 = vmul.f32 %v1945, %v1960
    %v1962 = vadd.f32 %v1961, 0.112945676
    %v1963 = vmul.f32 %v1945, %v1962
    %v1964 = vadd.f32 %v1963, 0.4994258
    %v1965 = vmul.f32 %v1945, %v1964
    %v1966 = vadd.f32 %v1965, 1.0
    %v1967 = vrcp.pop %v1966
    %v1968 = vmul.f32 %v1966, %v1967
    %v1969 = vsub.f32 1.0, %v1968
    %v1970 = vmul.f32 %v1967, %v1969
    %v1971 = vadd.f32 %v1967, %v1970
    %vm1972 = vweird.f32 %v1966
    %vm1973 = vweird.f32 %v1967
    %vm1974 = vmor %vm1972, %vm1973
    %v1975 = vsel %vm1974, %v1967, %v1971
    %v1976 = vand.u32 2147483647, %v1966
    %vm1977 = vcmp.eq.f32.partialorder %v1976, 8.507059e+37
    %v1978 = vand.u32 %v1966, 2147483648
    %v1979 = vor.u32 1.1754944e-38, %v1978
    %v1980 = vsel %vm1977, %v1979, %v1975
    %v1981 = vmul.f32 %v1956, %v1980
    %v1982 = vmin.f32 %v1981, 1.0
    %v1983 = vmax.f32 %v1982, -1.0
    %v1984 = vmul.f32 %v1851, %v1851
    %v1985 = vmin.f32 16.0, %v1984
    %v1986 = vmul.f32 %v1985, 2.1237322e-06
    %v1987 = vadd.f32 %v1986, 0.00028619796
    %v1988 = vmul.f32 %v1985, %v1987
    %v1989 = vadd.f32 %v1988, 0.0036580483
    %v1990 = vmul.f32 %v1985, %v1989
    %v1991 = vadd.f32 %v1990, 0.05243302
    %v1992 = vmul.f32 %v1985, %v1991
    %v1993 = vadd.f32 %v1992, 0.18741608
    %v1994 = vmul.f32 %v1985, %v1993
    %v1995 = vadd.f32 %v1994, 1.1283791
    %v1996 = vmul.f32 %v1851, %v1995
    %v1997 = vmul.f32 %v1985, 3.8918573e-05
    %v1998 = vadd.f32 %v1997, 0.001143296
    %v1999 = vmul.f32 %v1985, %v1998
    %v2000 = vadd.f32 %v1999, 0.014752088
    %v2001 = vmul.f32 %v1985, %v2000
    %v2002 = vadd.f32 %v2001, 0.112945676
    %v2003 = vmul.f32 %v1985, %v2002
    %v2004 = vadd.f32 %v2003, 0.4994258
    %v2005 = vmul.f32 %v1985, %v2004
    %v2006 = vadd.f32 %v2005, 1.0
    %v2007 = vrcp.pop %v2006
    %v2008 = vmul.f32 %v2006, %v2007
    %v2009 = vsub.f32 1.0, %v2008
    %v2010 = vmul.f32 %v2007, %v2009
    %v2011 = vadd.f32 %v2007, %v2010
    %vm2012 = vweird.f32 %v2006
    %vm2013 = vweird.f32 %v2007
    %vm2014 = vmor %vm2012, %vm2013
    %v2015 = vsel %vm2014, %v2007, %v2011
    %v2016 = vand.u32 2147483647, %v2006
    %vm2017 = vcmp.eq.f32.partialorder %v2016, 8.507059e+37
    %v2018 = vand.u32 %v2006, 2147483648
    %v2019 = vor.u32 1.1754944e-38, %v2018
    %v2020 = vsel %vm2017, %v2019, %v2015
    %v2021 = vmul.f32 %v1996, %v2020
    %v2022 = vmin.f32 %v2021, 1.0
    %v2023 = vmax.f32 %v2022, -1.0
    %v2024 = vmul.f32 %v1852, %v1852
    %v2025 = vmin.f32 16.0, %v2024
    %v2026 = vmul.f32 %v2025, 2.1237322e-06
    %v2027 = vadd.f32 %v2026, 0.00028619796
    %v2028 = vmul.f32 %v2025, %v2027
    %v2029 = vadd.f32 %v2028, 0.0036580483
    %v2030 = vmul.f32 %v2025, %v2029
    %v2031 = vadd.f32 %v2030, 0.05243302
    %v2032 = vmul.f32 %v2025, %v2031
    %v2033 = vadd.f32 %v2032, 0.18741608
    %v2034 = vmul.f32 %v2025, %v2033
    %v2035 = vadd.f32 %v2034, 1.1283791
    %v2036 = vmul.f32 %v1852, %v2035
    %v2037 = vmul.f32 %v2025, 3.8918573e-05
    %v2038 = vadd.f32 %v2037, 0.001143296
    %v2039 = vmul.f32 %v2025, %v2038
    %v2040 = vadd.f32 %v2039, 0.014752088
    %v2041 = vmul.f32 %v2025, %v2040
    %v2042 = vadd.f32 %v2041, 0.112945676
    %v2043 = vmul.f32 %v2025, %v2042
    %v2044 = vadd.f32 %v2043, 0.4994258
    %v2045 = vmul.f32 %v2025, %v2044
    %v2046 = vadd.f32 %v2045, 1.0
    %v2047 = vrcp.pop %v2046
    %v2048 = vmul.f32 %v2046, %v2047
    %v2049 = vsub.f32 1.0, %v2048
    %v2050 = vmul.f32 %v2047, %v2049
    %v2051 = vadd.f32 %v2047, %v2050
    %vm2052 = vweird.f32 %v2046
    %vm2053 = vweird.f32 %v2047
    %vm2054 = vmor %vm2052, %vm2053
    %v2055 = vsel %vm2054, %v2047, %v2051
    %v2056 = vand.u32 2147483647, %v2046
    %vm2057 = vcmp.eq.f32.partialorder %v2056, 8.507059e+37
    %v2058 = vand.u32 %v2046, 2147483648
    %v2059 = vor.u32 1.1754944e-38, %v2058
    %v2060 = vsel %vm2057, %v2059, %v2055
    %v2061 = vmul.f32 %v2036, %v2060
    %v2062 = vmin.f32 %v2061, 1.0
    %v2063 = vmax.f32 %v2062, -1.0
    %v2064 = vmul.f32 %v1853, %v1853
    %v2065 = vmin.f32 16.0, %v2064
    %v2066 = vmul.f32 %v2065, 2.1237322e-06
    %v2067 = vadd.f32 %v2066, 0.00028619796
    %v2068 = vmul.f32 %v2065, %v2067
    %v2069 = vadd.f32 %v2068, 0.0036580483
    %v2070 = vmul.f32 %v2065, %v2069
    %v2071 = vadd.f32 %v2070, 0.05243302
    %v2072 = vmul.f32 %v2065, %v2071
    %v2073 = vadd.f32 %v2072, 0.18741608
    %v2074 = vmul.f32 %v2065, %v2073
    %v2075 = vadd.f32 %v2074, 1.1283791
    %v2076 = vmul.f32 %v1853, %v2075
    %v2077 = vmul.f32 %v2065, 3.8918573e-05
    %v2078 = vadd.f32 %v2077, 0.001143296
    %v2079 = vmul.f32 %v2065, %v2078
    %v2080 = vadd.f32 %v2079, 0.014752088
    %v2081 = vmul.f32 %v2065, %v2080
    %v2082 = vadd.f32 %v2081, 0.112945676
    %v2083 = vmul.f32 %v2065, %v2082
    %v2084 = vadd.f32 %v2083, 0.4994258
    %v2085 = vmul.f32 %v2065, %v2084
    %v2086 = vadd.f32 %v2085, 1.0
    %v2087 = vrcp.pop %v2086
    %v2088 = vmul.f32 %v2086, %v2087
    %v2089 = vsub.f32 1.0, %v2088
    %v2090 = vmul.f32 %v2087, %v2089
    %v2091 = vadd.f32 %v2087, %v2090
    %vm2092 = vweird.f32 %v2086
    %vm2093 = vweird.f32 %v2087
    %vm2094 = vmor %vm2092, %vm2093
    %v2095 = vsel %vm2094, %v2087, %v2091
    %v2096 = vand.u32 2147483647, %v2086
    %vm2097 = vcmp.eq.f32.partialorder %v2096, 8.507059e+37
    %v2098 = vand.u32 %v2086, 2147483648
    %v2099 = vor.u32 1.1754944e-38, %v2098
    %v2100 = vsel %vm2097, %v2099, %v2095
    %v2101 = vmul.f32 %v2076, %v2100
    %v2102 = vmin.f32 %v2101, 1.0
    %v2103 = vmax.f32 %v2102, -1.0
    %v2104 = vmul.f32 %v1854, %v1854
    %v2105 = vmin.f32 16.0, %v2104
    %v2106 = vmul.f32 %v2105, 2.1237322e-06
    %v2107 = vadd.f32 %v2106, 0.00028619796
    %v2108 = vmul.f32 %v2105, %v2107
    %v2109 = vadd.f32 %v2108, 0.0036580483
    %v2110 = vmul.f32 %v2105, %v2109
    %v2111 = vadd.f32 %v2110, 0.05243302
    %v2112 = vmul.f32 %v2105, %v2111
    %v2113 = vadd.f32 %v2112, 0.18741608
    %v2114 = vmul.f32 %v2105, %v2113
    %v2115 = vadd.f32 %v2114, 1.1283791
    %v2116 = vmul.f32 %v1854, %v2115
    %v2117 = vmul.f32 %v2105, 3.8918573e-05
    %v2118 = vadd.f32 %v2117, 0.001143296
    %v2119 = vmul.f32 %v2105, %v2118
    %v2120 = vadd.f32 %v2119, 0.014752088
    %v2121 = vmul.f32 %v2105, %v2120
    %v2122 = vadd.f32 %v2121, 0.112945676
    %v2123 = vmul.f32 %v2105, %v2122
    %v2124 = vadd.f32 %v2123, 0.4994258
    %v2125 = vmul.f32 %v2105, %v2124
    %v2126 = vadd.f32 %v2125, 1.0
    %v2127 = vrcp.pop %v2126
    %v2128 = vmul.f32 %v2126, %v2127
    %v2129 = vsub.f32 1.0, %v2128
    %v2130 = vmul.f32 %v2127, %v2129
    %v2131 = vadd.f32 %v2127, %v2130
    %vm2132 = vweird.f32 %v2126
    %vm2133 = vweird.f32 %v2127
    %vm2134 = vmor %vm2132, %vm2133
    %v2135 = vsel %vm2134, %v2127, %v2131
    %v2136 = vand.u32 2147483647, %v2126
    %vm2137 = vcmp.eq.f32.partialorder %v2136, 8.507059e+37
    %v2138 = vand.u32 %v2126, 2147483648
    %v2139 = vor.u32 1.1754944e-38, %v2138
    %v2140 = vsel %vm2137, %v2139, %v2135
    %v2141 = vmul.f32 %v2116, %v2140
    %v2142 = vmin.f32 %v2141, 1.0
    %v2143 = vmax.f32 %v2142, -1.0
    %v2144 = vmul.f32 %v1855, %v1855
    %v2145 = vmin.f32 16.0, %v2144
    %v2146 = vmul.f32 %v2145, 2.1237322e-06
    %v2147 = vadd.f32 %v2146, 0.00028619796
    %v2148 = vmul.f32 %v2145, %v2147
    %v2149 = vadd.f32 %v2148, 0.0036580483
    %v2150 = vmul.f32 %v2145, %v2149
    %v2151 = vadd.f32 %v2150, 0.05243302
    %v2152 = vmul.f32 %v2145, %v2151
    %v2153 = vadd.f32 %v2152, 0.18741608
    %v2154 = vmul.f32 %v2145, %v2153
    %v2155 = vadd.f32 %v2154, 1.1283791
    %v2156 = vmul.f32 %v1855, %v2155
    %v2157 = vmul.f32 %v2145, 3.8918573e-05
    %v2158 = vadd.f32 %v2157, 0.001143296
    %v2159 = vmul.f32 %v2145, %v2158
    %v2160 = vadd.f32 %v2159, 0.014752088
    %v2161 = vmul.f32 %v2145, %v2160
    %v2162 = vadd.f32 %v2161, 0.112945676
    %v2163 = vmul.f32 %v2145, %v2162
    %v2164 = vadd.f32 %v2163, 0.4994258
    %v2165 = vmul.f32 %v2145, %v2164
    %v2166 = vadd.f32 %v2165, 1.0
    %v2167 = vrcp.pop %v2166
    %v2168 = vmul.f32 %v2166, %v2167
    %v2169 = vsub.f32 1.0, %v2168
    %v2170 = vmul.f32 %v2167, %v2169
    %v2171 = vadd.f32 %v2167, %v2170
    %vm2172 = vweird.f32 %v2166
    %vm2173 = vweird.f32 %v2167
    %vm2174 = vmor %vm2172, %vm2173
    %v2175 = vsel %vm2174, %v2167, %v2171
    %v2176 = vand.u32 2147483647, %v2166
    %vm2177 = vcmp.eq.f32.partialorder %v2176, 8.507059e+37
    %v2178 = vand.u32 %v2166, 2147483648
    %v2179 = vor.u32 1.1754944e-38, %v2178
    %v2180 = vsel %vm2177, %v2179, %v2175
    %v2181 = vmul.f32 %v2156, %v2180
    %v2182 = vmin.f32 %v2181, 1.0
    %v2183 = vmax.f32 %v2182, -1.0
    %v2184 = vmul.f32 %v1856, %v1856
    %v2185 = vmin.f32 16.0, %v2184
    %v2186 = vmul.f32 %v2185, 2.1237322e-06
    %v2187 = vadd.f32 %v2186, 0.00028619796
    %v2188 = vmul.f32 %v2185, %v2187
    %v2189 = vadd.f32 %v2188, 0.0036580483
    %v2190 = vmul.f32 %v2185, %v2189
    %v2191 = vadd.f32 %v2190, 0.05243302
    %v2192 = vmul.f32 %v2185, %v2191
    %v2193 = vadd.f32 %v2192, 0.18741608
    %v2194 = vmul.f32 %v2185, %v2193
    %v2195 = vadd.f32 %v2194, 1.1283791
    %v2196 = vmul.f32 %v1856, %v2195
    %v2197 = vmul.f32 %v2185, 3.8918573e-05
    %v2198 = vadd.f32 %v2197, 0.001143296
    %v2199 = vmul.f32 %v2185, %v2198
    %v2200 = vadd.f32 %v2199, 0.014752088
    %v2201 = vmul.f32 %v2185, %v2200
    %v2202 = vadd.f32 %v2201, 0.112945676
    %v2203 = vmul.f32 %v2185, %v2202
    %v2204 = vadd.f32 %v2203, 0.4994258
    %v2205 = vmul.f32 %v2185, %v2204
    %v2206 = vadd.f32 %v2205, 1.0
    %v2207 = vrcp.pop %v2206
    %v2208 = vmul.f32 %v2206, %v2207
    %v2209 = vsub.f32 1.0, %v2208
    %v2210 = vmul.f32 %v2207, %v2209
    %v2211 = vadd.f32 %v2207, %v2210
    %vm2212 = vweird.f32 %v2206
    %vm2213 = vweird.f32 %v2207
    %vm2214 = vmor %vm2212, %vm2213
    %v2215 = vsel %vm2214, %v2207, %v2211
    %v2216 = vand.u32 2147483647, %v2206
    %vm2217 = vcmp.eq.f32.partialorder %v2216, 8.507059e+37
    %v2218 = vand.u32 %v2206, 2147483648
    %v2219 = vor.u32 1.1754944e-38, %v2218
    %v2220 = vsel %vm2217, %v2219, %v2215
    %v2221 = vmul.f32 %v2196, %v2220
    %v2222 = vmin.f32 %v2221, 1.0
    %v2223 = vmax.f32 %v2222, -1.0
    %v2224 = vmul.f32 %v1857, %v1857
    %v2225 = vmin.f32 16.0, %v2224
    %v2226 = vmul.f32 %v2225, 2.1237322e-06
    %v2227 = vadd.f32 %v2226, 0.00028619796
    %v2228 = vmul.f32 %v2225, %v2227
    %v2229 = vadd.f32 %v2228, 0.0036580483
    %v2230 = vmul.f32 %v2225, %v2229
    %v2231 = vadd.f32 %v2230, 0.05243302
    %v2232 = vmul.f32 %v2225, %v2231
    %v2233 = vadd.f32 %v2232, 0.18741608
    %v2234 = vmul.f32 %v2225, %v2233
    %v2235 = vadd.f32 %v2234, 1.1283791
    %v2236 = vmul.f32 %v1857, %v2235
    %v2237 = vmul.f32 %v2225, 3.8918573e-05
    %v2238 = vadd.f32 %v2237, 0.001143296
    %v2239 = vmul.f32 %v2225, %v2238
    %v2240 = vadd.f32 %v2239, 0.014752088
    %v2241 = vmul.f32 %v2225, %v2240
    %v2242 = vadd.f32 %v2241, 0.112945676
    %v2243 = vmul.f32 %v2225, %v2242
    %v2244 = vadd.f32 %v2243, 0.4994258
    %v2245 = vmul.f32 %v2225, %v2244
    %v2246 = vadd.f32 %v2245, 1.0
    %v2247 = vrcp.pop %v2246
    %v2248 = vmul.f32 %v2246, %v2247
    %v2249 = vsub.f32 1.0, %v2248
    %v2250 = vmul.f32 %v2247, %v2249
    %v2251 = vadd.f32 %v2247, %v2250
    %vm2252 = vweird.f32 %v2246
    %vm2253 = vweird.f32 %v2247
    %vm2254 = vmor %vm2252, %vm2253
    %v2255 = vsel %vm2254, %v2247, %v2251
    %v2256 = vand.u32 2147483647, %v2246
    %vm2257 = vcmp.eq.f32.partialorder %v2256, 8.507059e+37
    %v2258 = vand.u32 %v2246, 2147483648
    %v2259 = vor.u32 1.1754944e-38, %v2258
    %v2260 = vsel %vm2257, %v2259, %v2255
    %v2261 = vmul.f32 %v2236, %v2260
    %v2262 = vmin.f32 %v2261, 1.0
    %v2263 = vmax.f32 %v2262, -1.0
    %v2264 = vmul.f32 %v1858, %v1858
    %v2265 = vmin.f32 16.0, %v2264
    %v2266 = vmul.f32 %v2265, 2.1237322e-06
    %v2267 = vadd.f32 %v2266, 0.00028619796
    %v2268 = vmul.f32 %v2265, %v2267
    %v2269 = vadd.f32 %v2268, 0.0036580483
    %v2270 = vmul.f32 %v2265, %v2269
    %v2271 = vadd.f32 %v2270, 0.05243302
    %v2272 = vmul.f32 %v2265, %v2271
    %v2273 = vadd.f32 %v2272, 0.18741608
    %v2274 = vmul.f32 %v2265, %v2273
    %v2275 = vadd.f32 %v2274, 1.1283791
    %v2276 = vmul.f32 %v1858, %v2275
    %v2277 = vmul.f32 %v2265, 3.8918573e-05
    %v2278 = vadd.f32 %v2277, 0.001143296
    %v2279 = vmul.f32 %v2265, %v2278
    %v2280 = vadd.f32 %v2279, 0.014752088
    %v2281 = vmul.f32 %v2265, %v2280
    %v2282 = vadd.f32 %v2281, 0.112945676
    %v2283 = vmul.f32 %v2265, %v2282
    %v2284 = vadd.f32 %v2283, 0.4994258
    %v2285 = vmul.f32 %v2265, %v2284
    %v2286 = vadd.f32 %v2285, 1.0
    %v2287 = vrcp.pop %v2286
    %v2288 = vmul.f32 %v2286, %v2287
    %v2289 = vsub.f32 1.0, %v2288
    %v2290 = vmul.f32 %v2287, %v2289
    %v2291 = vadd.f32 %v2287, %v2290
    %vm2292 = vweird.f32 %v2286
    %vm2293 = vweird.f32 %v2287
    %vm2294 = vmor %vm2292, %vm2293
    %v2295 = vsel %vm2294, %v2287, %v2291
    %v2296 = vand.u32 2147483647, %v2286
    %vm2297 = vcmp.eq.f32.partialorder %v2296, 8.507059e+37
    %v2298 = vand.u32 %v2286, 2147483648
    %v2299 = vor.u32 1.1754944e-38, %v2298
    %v2300 = vsel %vm2297, %v2299, %v2295
    %v2301 = vmul.f32 %v2276, %v2300
    %v2302 = vmin.f32 %v2301, 1.0
    %v2303 = vmax.f32 %v2302, -1.0
    %v2304 = vmul.f32 %v1859, %v1859
    %v2305 = vmin.f32 16.0, %v2304
    %v2306 = vmul.f32 %v2305, 2.1237322e-06
    %v2307 = vadd.f32 %v2306, 0.00028619796
    %v2308 = vmul.f32 %v2305, %v2307
    %v2309 = vadd.f32 %v2308, 0.0036580483
    %v2310 = vmul.f32 %v2305, %v2309
    %v2311 = vadd.f32 %v2310, 0.05243302
    %v2312 = vmul.f32 %v2305, %v2311
    %v2313 = vadd.f32 %v2312, 0.18741608
    %v2314 = vmul.f32 %v2305, %v2313
    %v2315 = vadd.f32 %v2314, 1.1283791
    %v2316 = vmul.f32 %v1859, %v2315
    %v2317 = vmul.f32 %v2305, 3.8918573e-05
    %v2318 = vadd.f32 %v2317, 0.001143296
    %v2319 = vmul.f32 %v2305, %v2318
    %v2320 = vadd.f32 %v2319, 0.014752088
    %v2321 = vmul.f32 %v2305, %v2320
    %v2322 = vadd.f32 %v2321, 0.112945676
    %v2323 = vmul.f32 %v2305, %v2322
    %v2324 = vadd.f32 %v2323, 0.4994258
    %v2325 = vmul.f32 %v2305, %v2324
    %v2326 = vadd.f32 %v2325, 1.0
    %v2327 = vrcp.pop %v2326
    %v2328 = vmul.f32 %v2326, %v2327
    %v2329 = vsub.f32 1.0, %v2328
    %v2330 = vmul.f32 %v2327, %v2329
    %v2331 = vadd.f32 %v2327, %v2330
    %vm2332 = vweird.f32 %v2326
    %vm2333 = vweird.f32 %v2327
    %vm2334 = vmor %vm2332, %vm2333
    %v2335 = vsel %vm2334, %v2327, %v2331
    %v2336 = vand.u32 2147483647, %v2326
    %vm2337 = vcmp.eq.f32.partialorder %v2336, 8.507059e+37
    %v2338 = vand.u32 %v2326, 2147483648
    %v2339 = vor.u32 1.1754944e-38, %v2338
    %v2340 = vsel %vm2337, %v2339, %v2335
    %v2341 = vmul.f32 %v2316, %v2340
    %v2342 = vmin.f32 %v2341, 1.0
    %v2343 = vmax.f32 %v2342, -1.0
    %v2344 = vmul.f32 %v1860, %v1860
    %v2345 = vmin.f32 16.0, %v2344
    %v2346 = vmul.f32 %v2345, 2.1237322e-06
    %v2347 = vadd.f32 %v2346, 0.00028619796
    %v2348 = vmul.f32 %v2345, %v2347
    %v2349 = vadd.f32 %v2348, 0.0036580483
    %v2350 = vmul.f32 %v2345, %v2349
    %v2351 = vadd.f32 %v2350, 0.05243302
    %v2352 = vmul.f32 %v2345, %v2351
    %v2353 = vadd.f32 %v2352, 0.18741608
    %v2354 = vmul.f32 %v2345, %v2353
    %v2355 = vadd.f32 %v2354, 1.1283791
    %v2356 = vmul.f32 %v1860, %v2355
    %v2357 = vmul.f32 %v2345, 3.8918573e-05
    %v2358 = vadd.f32 %v2357, 0.001143296
    %v2359 = vmul.f32 %v2345, %v2358
    %v2360 = vadd.f32 %v2359, 0.014752088
    %v2361 = vmul.f32 %v2345, %v2360
    %v2362 = vadd.f32 %v2361, 0.112945676
    %v2363 = vmul.f32 %v2345, %v2362
    %v2364 = vadd.f32 %v2363, 0.4994258
    %v2365 = vmul.f32 %v2345, %v2364
    %v2366 = vadd.f32 %v2365, 1.0
    %v2367 = vrcp.pop %v2366
    %v2368 = vmul.f32 %v2366, %v2367
    %v2369 = vsub.f32 1.0, %v2368
    %v2370 = vmul.f32 %v2367, %v2369
    %v2371 = vadd.f32 %v2367, %v2370
    %vm2372 = vweird.f32 %v2366
    %vm2373 = vweird.f32 %v2367
    %vm2374 = vmor %vm2372, %vm2373
    %v2375 = vsel %vm2374, %v2367, %v2371
    %v2376 = vand.u32 2147483647, %v2366
    %vm2377 = vcmp.eq.f32.partialorder %v2376, 8.507059e+37
    %v2378 = vand.u32 %v2366, 2147483648
    %v2379 = vor.u32 1.1754944e-38, %v2378
    %v2380 = vsel %vm2377, %v2379, %v2375
    %v2381 = vmul.f32 %v2356, %v2380
    %v2382 = vmin.f32 %v2381, 1.0
    %v2383 = vmax.f32 %v2382, -1.0
    %v2384 = vmul.f32 %v1861, %v1861
    %v2385 = vmin.f32 16.0, %v2384
    %v2386 = vmul.f32 %v2385, 2.1237322e-06
    %v2387 = vadd.f32 %v2386, 0.00028619796
    %v2388 = vmul.f32 %v2385, %v2387
    %v2389 = vadd.f32 %v2388, 0.0036580483
    %v2390 = vmul.f32 %v2385, %v2389
    %v2391 = vadd.f32 %v2390, 0.05243302
    %v2392 = vmul.f32 %v2385, %v2391
    %v2393 = vadd.f32 %v2392, 0.18741608
    %v2394 = vmul.f32 %v2385, %v2393
    %v2395 = vadd.f32 %v2394, 1.1283791
    %v2396 = vmul.f32 %v1861, %v2395
    %v2397 = vmul.f32 %v2385, 3.8918573e-05
    %v2398 = vadd.f32 %v2397, 0.001143296
    %v2399 = vmul.f32 %v2385, %v2398
    %v2400 = vadd.f32 %v2399, 0.014752088
    %v2401 = vmul.f32 %v2385, %v2400
    %v2402 = vadd.f32 %v2401, 0.112945676
    %v2403 = vmul.f32 %v2385, %v2402
    %v2404 = vadd.f32 %v2403, 0.4994258
    %v2405 = vmul.f32 %v2385, %v2404
    %v2406 = vadd.f32 %v2405, 1.0
    %v2407 = vrcp.pop %v2406
    %v2408 = vmul.f32 %v2406, %v2407
    %v2409 = vsub.f32 1.0, %v2408
    %v2410 = vmul.f32 %v2407, %v2409
    %v2411 = vadd.f32 %v2407, %v2410
    %vm2412 = vweird.f32 %v2406
    %vm2413 = vweird.f32 %v2407
    %vm2414 = vmor %vm2412, %vm2413
    %v2415 = vsel %vm2414, %v2407, %v2411
    %v2416 = vand.u32 2147483647, %v2406
    %vm2417 = vcmp.eq.f32.partialorder %v2416, 8.507059e+37
    %v2418 = vand.u32 %v2406, 2147483648
    %v2419 = vor.u32 1.1754944e-38, %v2418
    %v2420 = vsel %vm2417, %v2419, %v2415
    %v2421 = vmul.f32 %v2396, %v2420
    %v2422 = vmin.f32 %v2421, 1.0
    %v2423 = vmax.f32 %v2422, -1.0
    %v2424 = vmul.f32 %v1862, %v1862
    %v2425 = vmin.f32 16.0, %v2424
    %v2426 = vmul.f32 %v2425, 2.1237322e-06
    %v2427 = vadd.f32 %v2426, 0.00028619796
    %v2428 = vmul.f32 %v2425, %v2427
    %v2429 = vadd.f32 %v2428, 0.0036580483
    %v2430 = vmul.f32 %v2425, %v2429
    %v2431 = vadd.f32 %v2430, 0.05243302
    %v2432 = vmul.f32 %v2425, %v2431
    %v2433 = vadd.f32 %v2432, 0.18741608
    %v2434 = vmul.f32 %v2425, %v2433
    %v2435 = vadd.f32 %v2434, 1.1283791
    %v2436 = vmul.f32 %v1862, %v2435
    %v2437 = vmul.f32 %v2425, 3.8918573e-05
    %v2438 = vadd.f32 %v2437, 0.001143296
    %v2439 = vmul.f32 %v2425, %v2438
    %v2440 = vadd.f32 %v2439, 0.014752088
    %v2441 = vmul.f32 %v2425, %v2440
    %v2442 = vadd.f32 %v2441, 0.112945676
    %v2443 = vmul.f32 %v2425, %v2442
    %v2444 = vadd.f32 %v2443, 0.4994258
    %v2445 = vmul.f32 %v2425, %v2444
    %v2446 = vadd.f32 %v2445, 1.0
    %v2447 = vrcp.pop %v2446
    %v2448 = vmul.f32 %v2446, %v2447
    %v2449 = vsub.f32 1.0, %v2448
    %v2450 = vmul.f32 %v2447, %v2449
    %v2451 = vadd.f32 %v2447, %v2450
    %vm2452 = vweird.f32 %v2446
    %vm2453 = vweird.f32 %v2447
    %vm2454 = vmor %vm2452, %vm2453
    %v2455 = vsel %vm2454, %v2447, %v2451
    %v2456 = vand.u32 2147483647, %v2446
    %vm2457 = vcmp.eq.f32.partialorder %v2456, 8.507059e+37
    %v2458 = vand.u32 %v2446, 2147483648
    %v2459 = vor.u32 1.1754944e-38, %v2458
    %v2460 = vsel %vm2457, %v2459, %v2455
    %v2461 = vmul.f32 %v2436, %v2460
    %v2462 = vmin.f32 %v2461, 1.0
    %v2463 = vmax.f32 %v2462, -1.0
    %v2464 = vmul.f32 %v1863, %v1863
    %v2465 = vmin.f32 16.0, %v2464
    %v2466 = vmul.f32 %v2465, 2.1237322e-06
    %v2467 = vadd.f32 %v2466, 0.00028619796
    %v2468 = vmul.f32 %v2465, %v2467
    %v2469 = vadd.f32 %v2468, 0.0036580483
    %v2470 = vmul.f32 %v2465, %v2469
    %v2471 = vadd.f32 %v2470, 0.05243302
    %v2472 = vmul.f32 %v2465, %v2471
    %v2473 = vadd.f32 %v2472, 0.18741608
    %v2474 = vmul.f32 %v2465, %v2473
    %v2475 = vadd.f32 %v2474, 1.1283791
    %v2476 = vmul.f32 %v1863, %v2475
    %v2477 = vmul.f32 %v2465, 3.8918573e-05
    %v2478 = vadd.f32 %v2477, 0.001143296
    %v2479 = vmul.f32 %v2465, %v2478
    %v2480 = vadd.f32 %v2479, 0.014752088
    %v2481 = vmul.f32 %v2465, %v2480
    %v2482 = vadd.f32 %v2481, 0.112945676
    %v2483 = vmul.f32 %v2465, %v2482
    %v2484 = vadd.f32 %v2483, 0.4994258
    %v2485 = vmul.f32 %v2465, %v2484
    %v2486 = vadd.f32 %v2485, 1.0
    %v2487 = vrcp.pop %v2486
    %v2488 = vmul.f32 %v2486, %v2487
    %v2489 = vsub.f32 1.0, %v2488
    %v2490 = vmul.f32 %v2487, %v2489
    %v2491 = vadd.f32 %v2487, %v2490
    %vm2492 = vweird.f32 %v2486
    %vm2493 = vweird.f32 %v2487
    %vm2494 = vmor %vm2492, %vm2493
    %v2495 = vsel %vm2494, %v2487, %v2491
    %v2496 = vand.u32 2147483647, %v2486
    %vm2497 = vcmp.eq.f32.partialorder %v2496, 8.507059e+37
    %v2498 = vand.u32 %v2486, 2147483648
    %v2499 = vor.u32 1.1754944e-38, %v2498
    %v2500 = vsel %vm2497, %v2499, %v2495
    %v2501 = vmul.f32 %v2476, %v2500
    %v2502 = vmin.f32 %v2501, 1.0
    %v2503 = vmax.f32 %v2502, -1.0
    %v2504 = vadd.f32 %v1903, 1.0
    %v2505 = vadd.f32 %v1943, 1.0
    %v2506 = vadd.f32 %v1983, 1.0
    %v2507 = vadd.f32 %v2023, 1.0
    %v2508 = vadd.f32 %v2063, 1.0
    %v2509 = vadd.f32 %v2103, 1.0
    %v2510 = vadd.f32 %v2143, 1.0
    %v2511 = vadd.f32 %v2183, 1.0
    %v2512 = vadd.f32 %v2223, 1.0
    %v2513 = vadd.f32 %v2263, 1.0
    %v2514 = vadd.f32 %v2303, 1.0
    %v2515 = vadd.f32 %v2343, 1.0
    %v2516 = vadd.f32 %v2383, 1.0
    %v2517 = vadd.f32 %v2423, 1.0
    %v2518 = vadd.f32 %v2463, 1.0
    %v2519 = vadd.f32 %v2503, 1.0
    %v2520 = vmul.f32 %v1832, %v2504
    %v2521 = vmul.f32 %v1833, %v2505
    %v2522 = vmul.f32 %v1834, %v2506
    %v2523 = vmul.f32 %v1835, %v2507
    %v2524 = vmul.f32 %v1836, %v2508
    %v2525 = vmul.f32 %v1837, %v2509
    %v2526 = vmul.f32 %v1838, %v2510
    %v2527 = vmul.f32 %v1839, %v2511
    %v2528 = vmul.f32 %v1840, %v2512
    %v2529 = vmul.f32 %v1841, %v2513
    %v2530 = vmul.f32 %v1842, %v2514
    %v2531 = vmul.f32 %v1843, %v2515
    %v2532 = vmul.f32 %v1844, %v2516
    %v2533 = vmul.f32 %v1845, %v2517
    %v2534 = vmul.f32 %v1846, %v2518
    %v2535 = vmul.f32 %v1847, %v2519
    %v2536 = vpack.c.bf16 %v2524, %v2520
    %v2537 = vpack.c.bf16 %v2525, %v2521
    %v2538 = vpack.c.bf16 %v2526, %v2522
    %v2539 = vpack.c.bf16 %v2527, %v2523
    %v2540 = vpack.c.bf16 %v2532, %v2528
    %v2541 = vpack.c.bf16 %v2533, %v2529
    %v2542 = vpack.c.bf16 %v2534, %v2530
    %v2543 = vpack.c.bf16 %v2535, %v2531
    %v2544 = vld [vmem:[#allocation13] sm:$0xf]
    %v2545 = vld [vmem:[#allocation13 + $0x4] sm:$0xf]
    %v2546 = vld [vmem:[#allocation13 + $0x8] sm:$0xf]
    %v2547 = vld [vmem:[#allocation13 + $0xc] sm:$0xf]
    %v2548 = vld [vmem:[#allocation13 + $0x10] sm:$0xf]
    %v2549 = vld [vmem:[#allocation13 + $0x14] sm:$0xf]
    %v2550 = vld [vmem:[#allocation13 + $0x18] sm:$0xf]
    %v2551 = vld [vmem:[#allocation13 + $0x1c] sm:$0xf]
    %v2552 = vld [vmem:[#allocation13 + $0x20] sm:$0xf]
    %v2553 = vld [vmem:[#allocation13 + $0x24] sm:$0xf]
    %v2554 = vld [vmem:[#allocation13 + $0x28] sm:$0xf]
    %v2555 = vld [vmem:[#allocation13 + $0x2c] sm:$0xf]
    %v2556 = vld [vmem:[#allocation13 + $0x30] sm:$0xf]
    %v2557 = vld [vmem:[#allocation13 + $0x34] sm:$0xf]
    %v2558 = vld [vmem:[#allocation13 + $0x38] sm:$0xf]
    %v2559 = vld [vmem:[#allocation13 + $0x3c] sm:$0xf]
    %v2560 = vld [vmem:[#allocation13 + $0x40] sm:$0xf]
    %v2561 = vld [vmem:[#allocation13 + $0x44] sm:$0xf]
    %v2562 = vld [vmem:[#allocation13 + $0x48] sm:$0xf]
    %v2563 = vld [vmem:[#allocation13 + $0x4c] sm:$0xf]
    %v2564 = vld [vmem:[#allocation13 + $0x50] sm:$0xf]
    %v2565 = vld [vmem:[#allocation13 + $0x54] sm:$0xf]
    %v2566 = vld [vmem:[#allocation13 + $0x58] sm:$0xf]
    %v2567 = vld [vmem:[#allocation13 + $0x5c] sm:$0xf]
    %v2568 = vld [vmem:[#allocation13 + $0x60] sm:$0xf]
    %v2569 = vld [vmem:[#allocation13 + $0x64] sm:$0xf]
    %v2570 = vld [vmem:[#allocation13 + $0x68] sm:$0xf]
    %v2571 = vld [vmem:[#allocation13 + $0x6c] sm:$0xf]
    %v2572 = vld [vmem:[#allocation13 + $0x70] sm:$0xf]
    %v2573 = vld [vmem:[#allocation13 + $0x74] sm:$0xf]
    %v2574 = vld [vmem:[#allocation13 + $0x78] sm:$0xf]
    %v2575 = vld [vmem:[#allocation13 + $0x7c] sm:$0xf]
    %v2576 = vld [vmem:[#allocation13 + $0x80] sm:$0xf]
    %v2577 = vld [vmem:[#allocation13 + $0x84] sm:$0xf]
    %v2578 = vld [vmem:[#allocation13 + $0x88] sm:$0xf]
    %v2579 = vld [vmem:[#allocation13 + $0x8c] sm:$0xf]
    %v2580 = vld [vmem:[#allocation13 + $0x90] sm:$0xf]
    %v2581 = vld [vmem:[#allocation13 + $0x94] sm:$0xf]
    %v2582 = vld [vmem:[#allocation13 + $0x98] sm:$0xf]
    %v2583 = vld [vmem:[#allocation13 + $0x9c] sm:$0xf]
    %v2584 = vld [vmem:[#allocation13 + $0xa0] sm:$0xf]
    %v2585 = vld [vmem:[#allocation13 + $0xa4] sm:$0xf]
    %v2586 = vld [vmem:[#allocation13 + $0xa8] sm:$0xf]
    %v2587 = vld [vmem:[#allocation13 + $0xac] sm:$0xf]
    %v2588 = vld [vmem:[#allocation13 + $0xb0] sm:$0xf]
    %v2589 = vld [vmem:[#allocation13 + $0xb4] sm:$0xf]
    %v2590 = vld [vmem:[#allocation13 + $0xb8] sm:$0xf]
    %v2591 = vld [vmem:[#allocation13 + $0xbc] sm:$0xf]
    %v2592 = vld [vmem:[#allocation13 + $0xc0] sm:$0xf]
    %v2593 = vld [vmem:[#allocation13 + $0xc4] sm:$0xf]
    %v2594 = vld [vmem:[#allocation13 + $0xc8] sm:$0xf]
    %v2595 = vld [vmem:[#allocation13 + $0xcc] sm:$0xf]
    %v2596 = vld [vmem:[#allocation13 + $0xd0] sm:$0xf]
    %v2597 = vld [vmem:[#allocation13 + $0xd4] sm:$0xf]
    %v2598 = vld [vmem:[#allocation13 + $0xd8] sm:$0xf]
    %v2599 = vld [vmem:[#allocation13 + $0xdc] sm:$0xf]
    %v2600 = vld [vmem:[#allocation13 + $0xe0] sm:$0xf]
    %v2601 = vld [vmem:[#allocation13 + $0xe4] sm:$0xf]
    %v2602 = vld [vmem:[#allocation13 + $0xe8] sm:$0xf]
    %v2603 = vld [vmem:[#allocation13 + $0xec] sm:$0xf]
    %v2604 = vld [vmem:[#allocation13 + $0xf0] sm:$0xf]
    %v2605 = vld [vmem:[#allocation13 + $0xf4] sm:$0xf]
    %v2606 = vld [vmem:[#allocation13 + $0xf8] sm:$0xf]
    %v2607 = vld [vmem:[#allocation13 + $0xfc] sm:$0xf]
    %v2609 = vperm.slane %v158, 0
    %v2675 = vunpack.c.l.b16 %v2544
    %v2676 = vunpack.c.l.b16 %v2545
    %v2677 = vunpack.c.l.b16 %v2546
    %v2678 = vunpack.c.l.b16 %v2547
    %v2679 = vunpack.c.l.b16 %v2548
    %v2680 = vunpack.c.l.b16 %v2549
    %v2681 = vunpack.c.l.b16 %v2550
    %v2682 = vunpack.c.l.b16 %v2551
    %v2683 = vunpack.c.l.b16 %v2552
    %v2684 = vunpack.c.l.b16 %v2553
    %v2685 = vunpack.c.l.b16 %v2554
    %v2686 = vunpack.c.l.b16 %v2555
    %v2687 = vunpack.c.l.b16 %v2556
    %v2688 = vunpack.c.l.b16 %v2557
    %v2689 = vunpack.c.l.b16 %v2558
    %v2690 = vunpack.c.l.b16 %v2559
    %v2691 = vunpack.c.l.b16 %v2560
    %v2692 = vunpack.c.l.b16 %v2561
    %v2693 = vunpack.c.l.b16 %v2562
    %v2694 = vunpack.c.l.b16 %v2563
    %v2695 = vunpack.c.l.b16 %v2564
    %v2696 = vunpack.c.l.b16 %v2565
    %v2697 = vunpack.c.l.b16 %v2566
    %v2698 = vunpack.c.l.b16 %v2567
    %v2699 = vunpack.c.l.b16 %v2568
    %v2700 = vunpack.c.l.b16 %v2569
    %v2701 = vunpack.c.l.b16 %v2570
    %v2702 = vunpack.c.l.b16 %v2571
    %v2703 = vunpack.c.l.b16 %v2572
    %v2704 = vunpack.c.l.b16 %v2573
    %v2705 = vunpack.c.l.b16 %v2574
    %v2706 = vunpack.c.l.b16 %v2575
    %v2707 = vunpack.c.l.b16 %v2576
    %v2708 = vunpack.c.l.b16 %v2577
    %v2709 = vunpack.c.l.b16 %v2578
    %v2710 = vunpack.c.l.b16 %v2579
    %v2711 = vunpack.c.l.b16 %v2580
    %v2712 = vunpack.c.l.b16 %v2581
    %v2713 = vunpack.c.l.b16 %v2582
    %v2714 = vunpack.c.l.b16 %v2583
    %v2715 = vunpack.c.l.b16 %v2584
    %v2716 = vunpack.c.l.b16 %v2585
    %v2717 = vunpack.c.l.b16 %v2586
    %v2718 = vunpack.c.l.b16 %v2587
    %v2719 = vunpack.c.l.b16 %v2588
    %v2720 = vunpack.c.l.b16 %v2589
    %v2721 = vunpack.c.l.b16 %v2590
    %v2722 = vunpack.c.l.b16 %v2591
    %v2723 = vunpack.c.l.b16 %v2592
    %v2724 = vunpack.c.l.b16 %v2593
    %v2725 = vunpack.c.l.b16 %v2594
    %v2726 = vunpack.c.l.b16 %v2595
    %v2727 = vunpack.c.l.b16 %v2596
    %v2728 = vunpack.c.l.b16 %v2597
    %v2729 = vunpack.c.l.b16 %v2598
    %v2730 = vunpack.c.l.b16 %v2599
    %v2731 = vunpack.c.l.b16 %v2600
    %v2732 = vunpack.c.l.b16 %v2601
    %v2733 = vunpack.c.l.b16 %v2602
    %v2734 = vunpack.c.l.b16 %v2603
    %v2735 = vunpack.c.l.b16 %v2604
    %v2736 = vunpack.c.l.b16 %v2605
    %v2737 = vunpack.c.l.b16 %v2606
    %v2738 = vunpack.c.l.b16 %v2607
    %v2739 = vpack.c.b16 %v2676, %v2675
    %v2740 = vpack.c.b16 %v2678, %v2677
    %v2741 = vpack.c.b16 %v2680, %v2679
    %v2742 = vpack.c.b16 %v2682, %v2681
    %v2743 = vpack.c.b16 %v2684, %v2683
    %v2744 = vpack.c.b16 %v2686, %v2685
    %v2745 = vpack.c.b16 %v2688, %v2687
    %v2746 = vpack.c.b16 %v2690, %v2689
    %v2747 = vpack.c.b16 %v2692, %v2691
    %v2748 = vpack.c.b16 %v2694, %v2693
    %v2749 = vpack.c.b16 %v2696, %v2695
    %v2750 = vpack.c.b16 %v2698, %v2697
    %v2751 = vpack.c.b16 %v2700, %v2699
    %v2752 = vpack.c.b16 %v2702, %v2701
    %v2753 = vpack.c.b16 %v2704, %v2703
    %v2754 = vpack.c.b16 %v2706, %v2705
    %v2755 = vpack.c.b16 %v2708, %v2707
    %v2756 = vpack.c.b16 %v2710, %v2709
    %v2757 = vpack.c.b16 %v2712, %v2711
    %v2758 = vpack.c.b16 %v2714, %v2713
    %v2759 = vpack.c.b16 %v2716, %v2715
    %v2760 = vpack.c.b16 %v2718, %v2717
    %v2761 = vpack.c.b16 %v2720, %v2719
    %v2762 = vpack.c.b16 %v2722, %v2721
    %v2763 = vpack.c.b16 %v2724, %v2723
    %v2764 = vpack.c.b16 %v2726, %v2725
    %v2765 = vpack.c.b16 %v2728, %v2727
    %v2766 = vpack.c.b16 %v2730, %v2729
    %v2767 = vpack.c.b16 %v2732, %v2731
    %v2768 = vpack.c.b16 %v2734, %v2733
    %v2769 = vpack.c.b16 %v2736, %v2735
    %v2770 = vpack.c.b16 %v2738, %v2737
    %2803 = vmatpush.bf16.msra.mxu0 %v2746
    %2804 = vmatpush.bf16.msra.mxu0 %v2745
    %2805 = vmatpush.bf16.msra.mxu0 %v2744
    %2806 = vmatpush.bf16.msra.mxu0 %v2743
    %2807 = vmatpush.bf16.msra.mxu0 %v2742
    %2808 = vmatpush.bf16.msra.mxu0 %v2741
    %2809 = vmatpush.bf16.msra.mxu0 %v2740
    %2810 = vmatpush.bf16.msra.mxu0 %v2739
    %2811 = vmatmul.bf16.gmra.mxu0 %v2536
    %v2812 = vpop.f32.mrf.mxu0
    %v2813 = vadd.f32 %v2609, %v2812
    %v2814 = vpop.f32.mrf.mxu0
    %v2815 = vadd.f32 %v2609, %v2814
    %2816 = vmatmul.bf16.gmra.mxu0 %v2540
    %v2817 = vpop.f32.mrf.mxu0
    %v2818 = vadd.f32 %v2609, %v2817
    %v2819 = vpop.f32.mrf.mxu0
    %v2820 = vadd.f32 %v2609, %v2819
    %2821 = vdwg.mxu0
    %2822 = vmatpush.bf16.msra.mxu0 %v2754
    %2823 = vmatpush.bf16.msra.mxu0 %v2753
    %2824 = vmatpush.bf16.msra.mxu0 %v2752
    %2825 = vmatpush.bf16.msra.mxu0 %v2751
    %2826 = vmatpush.bf16.msra.mxu0 %v2750
    %2827 = vmatpush.bf16.msra.mxu0 %v2749
    %2828 = vmatpush.bf16.msra.mxu0 %v2748
    %2829 = vmatpush.bf16.msra.mxu0 %v2747
    %2830 = vmatmul.bf16.gmra.mxu0 %v2537
    %v2831 = vpop.f32.mrf.mxu0
    %v2832 = vadd.f32 %v2813, %v2831
    %v2833 = vpop.f32.mrf.mxu0
    %v2834 = vadd.f32 %v2815, %v2833
    %2835 = vmatmul.bf16.gmra.mxu0 %v2541
    %v2836 = vpop.f32.mrf.mxu0
    %v2837 = vadd.f32 %v2818, %v2836
    %v2838 = vpop.f32.mrf.mxu0
    %v2839 = vadd.f32 %v2820, %v2838
    %2840 = vdwg.mxu0
    %2841 = vmatpush.bf16.msra.mxu0 %v2762
    %2842 = vmatpush.bf16.msra.mxu0 %v2761
    %2843 = vmatpush.bf16.msra.mxu0 %v2760
    %2844 = vmatpush.bf16.msra.mxu0 %v2759
    %2845 = vmatpush.bf16.msra.mxu0 %v2758
    %2846 = vmatpush.bf16.msra.mxu0 %v2757
    %2847 = vmatpush.bf16.msra.mxu0 %v2756
    %2848 = vmatpush.bf16.msra.mxu0 %v2755
    %2849 = vmatmul.bf16.gmra.mxu0 %v2538
    %v2850 = vpop.f32.mrf.mxu0
    %v2851 = vadd.f32 %v2832, %v2850
    %v2852 = vpop.f32.mrf.mxu0
    %v2853 = vadd.f32 %v2834, %v2852
    %2854 = vmatmul.bf16.gmra.mxu0 %v2542
    %v2855 = vpop.f32.mrf.mxu0
    %v2856 = vadd.f32 %v2837, %v2855
    %v2857 = vpop.f32.mrf.mxu0
    %v2858 = vadd.f32 %v2839, %v2857
    %2859 = vdwg.mxu0
    %2860 = vmatpush.bf16.msra.mxu0 %v2770
    %2861 = vmatpush.bf16.msra.mxu0 %v2769
    %2862 = vmatpush.bf16.msra.mxu0 %v2768
    %2863 = vmatpush.bf16.msra.mxu0 %v2767
    %2864 = vmatpush.bf16.msra.mxu0 %v2766
    %2865 = vmatpush.bf16.msra.mxu0 %v2765
    %2866 = vmatpush.bf16.msra.mxu0 %v2764
    %2867 = vmatpush.bf16.msra.mxu0 %v2763
    %2868 = vmatmul.bf16.gmra.mxu0 %v2539
    %v2869 = vpop.f32.mrf.mxu0
    %v2870 = vadd.f32 %v2851, %v2869
    %v2871 = vpop.f32.mrf.mxu0
    %v2872 = vadd.f32 %v2853, %v2871
    %2873 = vmatmul.bf16.gmra.mxu0 %v2543
    %v2874 = vpop.f32.mrf.mxu0
    %v2875 = vadd.f32 %v2856, %v2874
    %v2876 = vpop.f32.mrf.mxu0
    %v2877 = vadd.f32 %v2858, %v2876
    %2878 = vdwg.mxu0
    %v2879 = vadd.f32 %v1455, %v2870
    %v2880 = vadd.f32 %v1456, %v2872
    %v2881 = vadd.f32 %v1457, %v2875
    %v2882 = vadd.f32 %v1458, %v2877
    %2883 = vst [vmem:[#allocation14] sm:$0xff] %v2879
    %2884 = vst [vmem:[#allocation14 + $0x8] sm:$0xff] %v2880
    %2885 = vst [vmem:[#allocation14 + $0x10] sm:$0xff] %v2881
    %2886 = vst [vmem:[#allocation14 + $0x18] sm:$0xff] %v2882
    // Predicated region
    $region78: #{tpu_custom_call.1} parent=1 // pred_check
      _
    $region79: #{tpu_custom_call.1} parent=1 // pred_check_branch
      %2888 = sbr.rel (0) target = $region81
    $region80: #{tpu_custom_call.1} parent=1 // pred_region
      %2890 = vsyncadd [#allocation4], 0
      %s2891 = sshll.u32 [#allocation14], 4
      %s2892 = int_to_ptr.vmem [resolvable:$true] %s2891
      %s2893 = sshll.u32 %s12, 4
      %s2894 = int_to_ptr.hbm [resolvable:$true] %s2893
      %2899 = dma.vmem_to_hbm [thread:$0]  %s2892, 512, %s2894, [#allocation4], 128, 128, 8
    $region81: #{tpu_custom_call.1} parent=1 // pred_fallthru
      _
    // Predicated region
    $region82: #{tpu_custom_call.1} parent=1 // pred_check
      _
    $region83: #{tpu_custom_call.1} parent=1 // pred_check_branch
      %2901 = sbr.rel (0) target = $region85
    $region84: #{tpu_custom_call.1} parent=1 // pred_region
      %2903 = dma.done [#allocation4], 512
    $region85: #{tpu_custom_call.1} parent=1 // pred_fallthru
      _
    %2904 = vsyncpa [#allocation3], 1
    %2905 = vsyncpa [#allocation6], 1
    %2906 = vsyncpa [#allocation9], 1
    %2907 = vsyncpa [#allocation12], 1
    %2908 = vsyncpa [#allocation4], 1

</llo_original>
